<compile_context>
chip_gen: v7x
topology: tpu7x:2x2x1
jax: 0.10.0
libtpu: 0.0.40
codegen_flags: <defaults>
</compile_context>

<pallas_src>
import functools

import jax
import jax.numpy as jnp
from jax.experimental import pallas as pl
from jax.experimental.pallas import tpu as pltpu

K = 7            # conv kernel size
PAD = K // 2     # 'same' padding = 3
LANES = 128


def _round_up(v, m):
    return (v + m - 1) // m * m


def _pick_pack(n, bytes_per_sample, hw):
    """Largest divisor of n (<= 16) whose packed block stays comfortably small."""
    nb = 1
    for d in range(1, min(n, 16) + 1):
        if n % d:
            continue
        if d * bytes_per_sample <= 2 * 1024 * 1024 and d * hw * 4 <= 512 * 1024:
            nb = d
    return nb


def _spatial_attention_kernel(w_ref, x_ref, o_ref, pbuf, *, nb, H, W):
    # w_ref : SMEM f32[2*K*K + 1]   BN-folded conv weights (1/C folded into the
    #                               mean-plane weights); last element = bias.
    # x_ref : VMEM (nb, C, H*W)     lane-dense input block (nb packed samples).
    # o_ref : VMEM (nb, C, H*W)     lane-dense output block.
    # pbuf  : VMEM (2, nb, L)       flattened, row-padded pooled planes, where
    #                               L = (H + 2*PAD)*W + 2*PAD.
    HW = H * W
    base = PAD * W + PAD            # flat offset of plane element (0, 0) in pbuf
    # L = base + HW + base; taps read indices [0, HW + 6*W + 6) = [0, L).

    # ---- zero only the border region (interior is fully overwritten below) ----
    zeros_edge = jnp.zeros((nb, base), jnp.float32)
    for c in range(2):
        pbuf[c, :, 0:base] = zeros_edge
        pbuf[c, :, base + HW:base + HW + base] = zeros_edge

    # ---- channel reductions, written straight into the flattened scratch ----
    # max is exact in the native dtype; the sum accumulates in f32 (its 1/C is
    # folded into the conv weights).  Per-sample loop: nb <= 16 small stores,
    # no (H*W) <-> (H, W) reshapes and no per-row scatter loops.
    for b in range(nb):
        xb = x_ref[b]                                             # (C, HW)
        ch_max = jnp.max(xb, axis=0, keepdims=True).astype(jnp.float32)
        ch_sum = jnp.sum(xb.astype(jnp.float32), axis=0, keepdims=True)
        pbuf[0, b:b + 1, base:base + HW] = ch_max
        pbuf[1, b:b + 1, base:base + HW] = ch_sum

    # ---- per-dx column masks: valid iff 0 <= (col + dx - PAD) < W ----
    col = jax.lax.broadcasted_iota(jnp.int32, (1, HW), 1) % W     # (1, HW)
    masks = []
    for dx in range(K):
        if dx < PAD:
            masks.append((col >= (PAD - dx)).astype(jnp.float32))
        elif dx == PAD:
            masks.append(None)                                    # always valid
        else:
            masks.append((col < (W + PAD - dx)).astype(jnp.float32))

    # ---- 7x7 'same' conv, 2 in-planes -> 1 out-plane (BN folded in) ----
    # Tap (dy, dx) is the lane-shifted slice pbuf[c, :, dy*W + dx :][:HW].
    # Every tap is re-loaded from VMEM (3 loads/cycle, no long live ranges);
    # two accumulators + per-dx inner sums give the VALU slots ILP.
    acc0 = jnp.zeros((nb, HW), jnp.float32)
    acc1 = jnp.zeros((nb, HW), jnp.float32)
    for c in range(2):
        wbase = c * K * K
        for dx in range(K):
            inner = w_ref[wbase + dx] * pbuf[c, :, dx:dx + HW]
            for dy in range(1, K):
                off = dy * W + dx
                inner = inner + w_ref[wbase + dy * K + dx] * pbuf[c, :, off:off + HW]
            if masks[dx] is not None:
                inner = inner * masks[dx]
            if dx & 1:
                acc1 = acc1 + inner
            else:
                acc0 = acc0 + inner
    att = jax.nn.sigmoid(acc0 + acc1 + w_ref[2 * K * K])          # (nb, HW) f32

    # ---- scale x: per-sample (1, HW) row broadcast against the (C, HW) block,
    # in the input's native dtype (no extra f32 temporaries), dense stores ----
    for b in range(nb):
        xb = x_ref[b]                                             # (C, HW)
        a_b = att[b:b + 1, :].astype(xb.dtype)                    # (1, HW)
        o_ref[b] = (xb * a_b).astype(o_ref.dtype)


def spatial_attention(x, conv_w, conv_b, bn_gamma, bn_beta, bn_mean, bn_var,
                      eps=1e-5):
    """x: (N, C, H, W).  conv_w: (1, 2, 7, 7), conv_b: (1,), bn_*: (1,)."""
    N, C, H, W = x.shape
    HW = H * W
    L = (H + 2 * PAD) * W + 2 * PAD

    # Fold inference-mode BatchNorm into the conv:
    #   bn(conv(p) + b) = scale*(conv(p) + b - mean) + beta, scale = g/sqrt(var+eps)
    scale = bn_gamma / jnp.sqrt(bn_var + eps)                       # (1,)
    w_fold = conv_w[0] * scale[0]                                   # (2, 7, 7)
    w_fold = w_fold.at[1].multiply(1.0 / C)     # fold 1/C of the channel mean
    b_fold = (conv_b - bn_mean) * scale + bn_beta                   # (1,)
    params = jnp.concatenate([w_fold.reshape(-1), b_fold]).astype(jnp.float32)

    # Lane-dense layout for the dominant C*H*W read/write traffic.
    x_flat = x.reshape(N, C, HW)

    # Pack several samples per grid step when the per-sample block is small.
    elt = jnp.dtype(x.dtype).itemsize
    per_sample = C * HW * elt
    nb = _pick_pack(N, per_sample, HW)

    # Right-sized VMEM request, capped by the physical per-core VMEM (safe on
    # v7x's 64 MiB/TC as well as v5e/v6e's 128 MiB).
    blk_bytes = nb * per_sample
    pbuf_bytes = 2 * _round_up(nb, 8) * _round_up(L, LANES) * 4
    tmp_bytes = 8 * nb * HW * 4
    needed = 4 * blk_bytes + pbuf_bytes + tmp_bytes          # in/out double-buffered
    phys = 64 * 1024 * 1024
    try:
        phys = min(phys, int(pltpu.get_tpu_info().vmem_capacity_bytes))
    except Exception:
        pass
    cap = int(phys * 0.85)
    vmem_limit = int(min(cap, max(needed + 4 * 1024 * 1024, 16 * 1024 * 1024)))

    kernel = functools.partial(_spatial_attention_kernel, nb=nb, H=H, W=W)
    out_flat = pl.pallas_call(
        kernel,
        out_shape=jax.ShapeDtypeStruct((N, C, HW), x.dtype),
        grid_spec=pltpu.PrefetchScalarGridSpec(
            num_scalar_prefetch=0,
            grid=(N // nb,),
            in_specs=[
                pl.BlockSpec(memory_space=pltpu.MemorySpace.SMEM),      # params
                pl.BlockSpec((nb, C, HW), lambda n: (n, 0, 0)),          # x
            ],
            out_specs=pl.BlockSpec((nb, C, HW), lambda n: (n, 0, 0)),
            scratch_shapes=[
                pltpu.VMEM((2, nb, L), jnp.float32),    # flattened padded pools
            ],
        ),
        compiler_params=pltpu.CompilerParams(
            dimension_semantics=("parallel",),
            vmem_limit_bytes=vmem_limit,
        ),
    )(params, x_flat)
    return out_flat.reshape(N, C, H, W)


def _reference(x, conv_w, conv_b, g, b, m, v, eps=1e-5):
    """Pure-JAX reference mirroring the PyTorch forward (inference BN)."""
    mx = jnp.max(x, axis=1, keepdims=True)
    mn = jnp.mean(x, axis=1, keepdims=True)
    pool = jnp.concatenate([mx, mn], axis=1)                        # (N, 2, H, W)
    conv = jax.lax.conv_general_dilated(
        pool, conv_w, window_strides=(1, 1), padding="SAME",
        dimension_numbers=("NCHW", "OIHW", "NCHW"))
    conv = conv + conv_b.reshape(1, -1, 1, 1)
    bn = (conv - m.reshape(1, -1, 1, 1)) / jnp.sqrt(
        v.reshape(1, -1, 1, 1) + eps) * g.reshape(1, -1, 1, 1) + b.reshape(1, -1, 1, 1)
    return x * jax.nn.sigmoid(bn)


if __name__ == "__main__":
    key = jax.random.PRNGKey(0)
    kx, kw, kb, kg, kbt, km, kv = jax.random.split(key, 7)

    N, C, H, W = 2, 4, 16, 16
    x = jax.random.normal(kx, (N, C, H, W), dtype=jnp.float32)

    # Deterministic synthetic parameters (Conv2d(2, 1, 7) + BatchNorm2d(1)).
    conv_w = 0.1 * jax.random.normal(kw, (1, 2, K, K), dtype=jnp.float32)
    conv_b = 0.1 * jax.random.normal(kb, (1,), dtype=jnp.float32)
    bn_gamma = 1.0 + 0.1 * jax.random.normal(kg, (1,), dtype=jnp.float32)
    bn_beta = 0.1 * jax.random.normal(kbt, (1,), dtype=jnp.float32)
    bn_mean = 0.1 * jax.random.normal(km, (1,), dtype=jnp.float32)
    bn_var = 1.0 + 0.1 * jnp.abs(jax.random.normal(kv, (1,), dtype=jnp.float32))

    out = spatial_attention(x, conv_w, conv_b, bn_gamma, bn_beta, bn_mean, bn_var)
    out = jax.block_until_ready(out)

    ref = _reference(x, conv_w, conv_b, bn_gamma, bn_beta, bn_mean, bn_var)
    assert out.shape == (N, C, H, W)
    assert jnp.allclose(out, ref, atol=1e-4, rtol=1e-4), (
        f"max abs diff {jnp.max(jnp.abs(out - ref))}")

    print("KERNEL_OK")
</pallas_src>

<mosaic_0001>
module attributes {stable_mosaic.version = 11 : i64} {
  func.func @_spatial_attention_kernel(%arg0: i32, %arg1: memref<99xf32, #tpu.memory_space<smem>>, %arg2: memref<2x4x256xf32, #tpu.memory_space<vmem>>, %arg3: memref<2x4x256xf32, #tpu.memory_space<vmem>>, %arg4: memref<2x2x358xf32, #tpu.memory_space<vmem>>) attributes {dimension_semantics = [#tpu.dimension_semantics<parallel>], iteration_bounds = array<i64: 1>, scalar_prefetch = 0 : i64, scratch_operands = 1 : i64, tpu.core_type = #tpu.core_type<tc>, window_params = [{transform_indices = @transform_0, window_bounds = array<i64: 99>}, {transform_indices = @transform_1, window_bounds = array<i64: 2, 4, 256>}, {transform_indices = @transform_2, window_bounds = array<i64: 2, 4, 256>}]} {
    %cst = arith.constant 0.000000e+00 : f32
    %0 = vector.broadcast %cst : f32 to vector<2x51xf32>
    %c0 = arith.constant 0 : index
    %c0_0 = arith.constant 0 : index
    %c0_1 = arith.constant 0 : index
    %1 = vector.load %arg4[%c0, %c0_0, %c0_1] : memref<2x2x358xf32, #tpu.memory_space<vmem>>, vector<1x2x51xf32>
    %2 = vector.shape_cast %1 : vector<1x2x51xf32> to vector<2x51xf32>
    %3 = vector.shape_cast %0 : vector<2x51xf32> to vector<1x2x51xf32>
    tpu.vector_store %arg4[%c0, %c0_0, %c0_1], %3 {strides = array<i32>} : memref<2x2x358xf32, #tpu.memory_space<vmem>>, vector<1x2x51xf32>,
    %c0_2 = arith.constant 0 : index
    %c0_3 = arith.constant 0 : index
    %c307 = arith.constant 307 : index
    %4 = vector.load %arg4[%c0_2, %c0_3, %c307] : memref<2x2x358xf32, #tpu.memory_space<vmem>>, vector<1x2x51xf32>
    %5 = vector.shape_cast %4 : vector<1x2x51xf32> to vector<2x51xf32>
    %6 = vector.shape_cast %0 : vector<2x51xf32> to vector<1x2x51xf32>
    tpu.vector_store %arg4[%c0_2, %c0_3, %c307], %6 {strides = array<i32>} : memref<2x2x358xf32, #tpu.memory_space<vmem>>, vector<1x2x51xf32>,
    %c1 = arith.constant 1 : index
    %c0_4 = arith.constant 0 : index
    %c0_5 = arith.constant 0 : index
    %7 = vector.load %arg4[%c1, %c0_4, %c0_5] : memref<2x2x358xf32, #tpu.memory_space<vmem>>, vector<1x2x51xf32>
    %8 = vector.shape_cast %7 : vector<1x2x51xf32> to vector<2x51xf32>
    %9 = vector.shape_cast %0 : vector<2x51xf32> to vector<1x2x51xf32>
    tpu.vector_store %arg4[%c1, %c0_4, %c0_5], %9 {strides = array<i32>} : memref<2x2x358xf32, #tpu.memory_space<vmem>>, vector<1x2x51xf32>,
    %c1_6 = arith.constant 1 : index
    %c0_7 = arith.constant 0 : index
    %c307_8 = arith.constant 307 : index
    %10 = vector.load %arg4[%c1_6, %c0_7, %c307_8] : memref<2x2x358xf32, #tpu.memory_space<vmem>>, vector<1x2x51xf32>
    %11 = vector.shape_cast %10 : vector<1x2x51xf32> to vector<2x51xf32>
    %12 = vector.shape_cast %0 : vector<2x51xf32> to vector<1x2x51xf32>
    tpu.vector_store %arg4[%c1_6, %c0_7, %c307_8], %12 {strides = array<i32>} : memref<2x2x358xf32, #tpu.memory_space<vmem>>, vector<1x2x51xf32>,
    %c0_9 = arith.constant 0 : index
    %c0_10 = arith.constant 0 : index
    %c0_11 = arith.constant 0 : index
    %13 = vector.load %arg2[%c0_9, %c0_10, %c0_11] : memref<2x4x256xf32, #tpu.memory_space<vmem>>, vector<1x4x256xf32>
    %14 = vector.shape_cast %13 : vector<1x4x256xf32> to vector<4x256xf32>
    %cst_12 = arith.constant dense<0xFF800000> : vector<256xf32>
    %15 = vector.multi_reduction <maximumf>, %14, %cst_12 [0] : vector<4x256xf32> to vector<256xf32>
    %16 = vector.shape_cast %15 : vector<256xf32> to vector<1x256xf32>
    %cst_13 = arith.constant dense<0.000000e+00> : vector<256xf32>
    %17 = vector.multi_reduction <add>, %14, %cst_13 [0] : vector<4x256xf32> to vector<256xf32>
    %18 = vector.shape_cast %17 : vector<256xf32> to vector<1x256xf32>
    %c0_14 = arith.constant 0 : index
    %c0_15 = arith.constant 0 : index
    %c51 = arith.constant 51 : index
    %19 = vector.load %arg4[%c0_14, %c0_15, %c51] : memref<2x2x358xf32, #tpu.memory_space<vmem>>, vector<1x1x256xf32>
    %20 = vector.shape_cast %19 : vector<1x1x256xf32> to vector<1x256xf32>
    %21 = vector.shape_cast %16 : vector<1x256xf32> to vector<1x1x256xf32>
    tpu.vector_store %arg4[%c0_14, %c0_15, %c51], %21 {strides = array<i32>} : memref<2x2x358xf32, #tpu.memory_space<vmem>>, vector<1x1x256xf32>,
    %c1_16 = arith.constant 1 : index
    %c0_17 = arith.constant 0 : index
    %c51_18 = arith.constant 51 : index
    %22 = vector.load %arg4[%c1_16, %c0_17, %c51_18] : memref<2x2x358xf32, #tpu.memory_space<vmem>>, vector<1x1x256xf32>
    %23 = vector.shape_cast %22 : vector<1x1x256xf32> to vector<1x256xf32>
    %24 = vector.shape_cast %18 : vector<1x256xf32> to vector<1x1x256xf32>
    tpu.vector_store %arg4[%c1_16, %c0_17, %c51_18], %24 {strides = array<i32>} : memref<2x2x358xf32, #tpu.memory_space<vmem>>, vector<1x1x256xf32>,
    %c1_19 = arith.constant 1 : index
    %c0_20 = arith.constant 0 : index
    %c0_21 = arith.constant 0 : index
    %25 = vector.load %arg2[%c1_19, %c0_20, %c0_21] : memref<2x4x256xf32, #tpu.memory_space<vmem>>, vector<1x4x256xf32>
    %26 = vector.shape_cast %25 : vector<1x4x256xf32> to vector<4x256xf32>
    %cst_22 = arith.constant dense<0xFF800000> : vector<256xf32>
    %27 = vector.multi_reduction <maximumf>, %26, %cst_22 [0] : vector<4x256xf32> to vector<256xf32>
    %28 = vector.shape_cast %27 : vector<256xf32> to vector<1x256xf32>
    %cst_23 = arith.constant dense<0.000000e+00> : vector<256xf32>
    %29 = vector.multi_reduction <add>, %26, %cst_23 [0] : vector<4x256xf32> to vector<256xf32>
    %30 = vector.shape_cast %29 : vector<256xf32> to vector<1x256xf32>
    %c0_24 = arith.constant 0 : index
    %c1_25 = arith.constant 1 : index
    %c51_26 = arith.constant 51 : index
    %31 = vector.load %arg4[%c0_24, %c1_25, %c51_26] : memref<2x2x358xf32, #tpu.memory_space<vmem>>, vector<1x1x256xf32>
    %32 = vector.shape_cast %31 : vector<1x1x256xf32> to vector<1x256xf32>
    %33 = vector.shape_cast %28 : vector<1x256xf32> to vector<1x1x256xf32>
    tpu.vector_store %arg4[%c0_24, %c1_25, %c51_26], %33 {strides = array<i32>} : memref<2x2x358xf32, #tpu.memory_space<vmem>>, vector<1x1x256xf32>,
    %c1_27 = arith.constant 1 : index
    %c1_28 = arith.constant 1 : index
    %c51_29 = arith.constant 51 : index
    %34 = vector.load %arg4[%c1_27, %c1_28, %c51_29] : memref<2x2x358xf32, #tpu.memory_space<vmem>>, vector<1x1x256xf32>
    %35 = vector.shape_cast %34 : vector<1x1x256xf32> to vector<1x256xf32>
    %36 = vector.shape_cast %30 : vector<1x256xf32> to vector<1x1x256xf32>
    tpu.vector_store %arg4[%c1_27, %c1_28, %c51_29], %36 {strides = array<i32>} : memref<2x2x358xf32, #tpu.memory_space<vmem>>, vector<1x1x256xf32>,
    %37 = tpu.iota {dimensions = array<i32: 1>} : vector<1x256xi32>
    %c16_i32 = arith.constant 16 : i32
    %c0_i32 = arith.constant 0 : i32
    %38 = arith.cmpi eq, %c16_i32, %c0_i32 : i32
    %c1_i32 = arith.constant 1 : i32
    %39 = arith.select %38, %c1_i32, %c16_i32 : i32
    %40 = vector.broadcast %39 : i32 to vector<1x256xi32>
    %41 = arith.remsi %37, %40 : vector<1x256xi32>
    %c0_i32_30 = arith.constant 0 : i32
    %42 = vector.broadcast %c0_i32_30 : i32 to vector<1x256xi32>
    %43 = arith.cmpi ne, %41, %42 : vector<1x256xi32>
    %c0_i32_31 = arith.constant 0 : i32
    %44 = vector.broadcast %c0_i32_31 : i32 to vector<1x256xi32>
    %45 = arith.cmpi slt, %41, %44 : vector<1x256xi32>
    %c0_i32_32 = arith.constant 0 : i32
    %46 = arith.cmpi slt, %39, %c0_i32_32 : i32
    %47 = vector.broadcast %46 : i1 to vector<1x256xi1>
    %48 = vector.broadcast %47 : vector<1x256xi1> to vector<1x256xi1>
    %49 = arith.xori %45, %48 : vector<1x256xi1>
    %50 = arith.andi %49, %43 : vector<1x256xi1>
    %51 = vector.broadcast %39 : i32 to vector<1x256xi32>
    %52 = arith.addi %41, %51 : vector<1x256xi32>
    %53 = arith.select %50, %52, %41 : vector<1x256xi1>, vector<1x256xi32>
    %c3_i32 = arith.constant 3 : i32
    %54 = vector.broadcast %c3_i32 : i32 to vector<1x256xi32>
    %55 = arith.cmpi sge, %53, %54 : vector<1x256xi32>
    %56 = arith.extui %55 : vector<1x256xi1> to vector<1x256xi32>
    %57 = arith.sitofp %56 : vector<1x256xi32> to vector<1x256xf32>
    %c2_i32 = arith.constant 2 : i32
    %58 = vector.broadcast %c2_i32 : i32 to vector<1x256xi32>
    %59 = arith.cmpi sge, %53, %58 : vector<1x256xi32>
    %60 = arith.extui %59 : vector<1x256xi1> to vector<1x256xi32>
    %61 = arith.sitofp %60 : vector<1x256xi32> to vector<1x256xf32>
    %c1_i32_33 = arith.constant 1 : i32
    %62 = vector.broadcast %c1_i32_33 : i32 to vector<1x256xi32>
    %63 = arith.cmpi sge, %53, %62 : vector<1x256xi32>
    %64 = arith.extui %63 : vector<1x256xi1> to vector<1x256xi32>
    %65 = arith.sitofp %64 : vector<1x256xi32> to vector<1x256xf32>
    %c15_i32 = arith.constant 15 : i32
    %66 = vector.broadcast %c15_i32 : i32 to vector<1x256xi32>
    %67 = arith.cmpi slt, %53, %66 : vector<1x256xi32>
    %68 = arith.extui %67 : vector<1x256xi1> to vector<1x256xi32>
    %69 = arith.sitofp %68 : vector<1x256xi32> to vector<1x256xf32>
    %c14_i32 = arith.constant 14 : i32
    %70 = vector.broadcast %c14_i32 : i32 to vector<1x256xi32>
    %71 = arith.cmpi slt, %53, %70 : vector<1x256xi32>
    %72 = arith.extui %71 : vector<1x256xi1> to vector<1x256xi32>
    %73 = arith.sitofp %72 : vector<1x256xi32> to vector<1x256xf32>
    %c13_i32 = arith.constant 13 : i32
    %74 = vector.broadcast %c13_i32 : i32 to vector<1x256xi32>
    %75 = arith.cmpi slt, %53, %74 : vector<1x256xi32>
    %76 = arith.extui %75 : vector<1x256xi1> to vector<1x256xi32>
    %77 = arith.sitofp %76 : vector<1x256xi32> to vector<1x256xf32>
    %cst_34 = arith.constant 0.000000e+00 : f32
    %78 = vector.broadcast %cst_34 : f32 to vector<2x256xf32>
    %cst_35 = arith.constant 0.000000e+00 : f32
    %79 = vector.broadcast %cst_35 : f32 to vector<2x256xf32>
    %c0_36 = arith.constant 0 : index
    %80 = memref.load %arg1[%c0_36] : memref<99xf32, #tpu.memory_space<smem>>
    %c0_37 = arith.constant 0 : index
    %c0_38 = arith.constant 0 : index
    %c0_39 = arith.constant 0 : index
    %81 = vector.load %arg4[%c0_37, %c0_38, %c0_39] : memref<2x2x358xf32, #tpu.memory_space<vmem>>, vector<1x2x256xf32>
    %82 = vector.shape_cast %81 : vector<1x2x256xf32> to vector<2x256xf32>
    %83 = vector.broadcast %80 : f32 to vector<2x256xf32>
    %84 = arith.mulf %83, %82 : vector<2x256xf32>
    %c7 = arith.constant 7 : index
    %85 = memref.load %arg1[%c7] : memref<99xf32, #tpu.memory_space<smem>>
    %c0_40 = arith.constant 0 : index
    %c0_41 = arith.constant 0 : index
    %c16 = arith.constant 16 : index
    %86 = vector.load %arg4[%c0_40, %c0_41, %c16] : memref<2x2x358xf32, #tpu.memory_space<vmem>>, vector<1x2x256xf32>
    %87 = vector.shape_cast %86 : vector<1x2x256xf32> to vector<2x256xf32>
    %88 = vector.broadcast %85 : f32 to vector<2x256xf32>
    %89 = arith.mulf %88, %87 : vector<2x256xf32>
    %90 = arith.addf %84, %89 : vector<2x256xf32>
    %c14 = arith.constant 14 : index
    %91 = memref.load %arg1[%c14] : memref<99xf32, #tpu.memory_space<smem>>
    %c0_42 = arith.constant 0 : index
    %c0_43 = arith.constant 0 : index
    %c32 = arith.constant 32 : index
    %92 = vector.load %arg4[%c0_42, %c0_43, %c32] : memref<2x2x358xf32, #tpu.memory_space<vmem>>, vector<1x2x256xf32>
    %93 = vector.shape_cast %92 : vector<1x2x256xf32> to vector<2x256xf32>
    %94 = vector.broadcast %91 : f32 to vector<2x256xf32>
    %95 = arith.mulf %94, %93 : vector<2x256xf32>
    %96 = arith.addf %90, %95 : vector<2x256xf32>
    %c21 = arith.constant 21 : index
    %97 = memref.load %arg1[%c21] : memref<99xf32, #tpu.memory_space<smem>>
    %c0_44 = arith.constant 0 : index
    %c0_45 = arith.constant 0 : index
    %c48 = arith.constant 48 : index
    %98 = vector.load %arg4[%c0_44, %c0_45, %c48] : memref<2x2x358xf32, #tpu.memory_space<vmem>>, vector<1x2x256xf32>
    %99 = vector.shape_cast %98 : vector<1x2x256xf32> to vector<2x256xf32>
    %100 = vector.broadcast %97 : f32 to vector<2x256xf32>
    %101 = arith.mulf %100, %99 : vector<2x256xf32>
    %102 = arith.addf %96, %101 : vector<2x256xf32>
    %c28 = arith.constant 28 : index
    %103 = memref.load %arg1[%c28] : memref<99xf32, #tpu.memory_space<smem>>
    %c0_46 = arith.constant 0 : index
    %c0_47 = arith.constant 0 : index
    %c64 = arith.constant 64 : index
    %104 = vector.load %arg4[%c0_46, %c0_47, %c64] : memref<2x2x358xf32, #tpu.memory_space<vmem>>, vector<1x2x256xf32>
    %105 = vector.shape_cast %104 : vector<1x2x256xf32> to vector<2x256xf32>
    %106 = vector.broadcast %103 : f32 to vector<2x256xf32>
    %107 = arith.mulf %106, %105 : vector<2x256xf32>
    %108 = arith.addf %102, %107 : vector<2x256xf32>
    %c35 = arith.constant 35 : index
    %109 = memref.load %arg1[%c35] : memref<99xf32, #tpu.memory_space<smem>>
    %c0_48 = arith.constant 0 : index
    %c0_49 = arith.constant 0 : index
    %c80 = arith.constant 80 : index
    %110 = vector.load %arg4[%c0_48, %c0_49, %c80] : memref<2x2x358xf32, #tpu.memory_space<vmem>>, vector<1x2x256xf32>
    %111 = vector.shape_cast %110 : vector<1x2x256xf32> to vector<2x256xf32>
    %112 = vector.broadcast %109 : f32 to vector<2x256xf32>
    %113 = arith.mulf %112, %111 : vector<2x256xf32>
    %114 = arith.addf %108, %113 : vector<2x256xf32>
    %c42 = arith.constant 42 : index
    %115 = memref.load %arg1[%c42] : memref<99xf32, #tpu.memory_space<smem>>
    %c0_50 = arith.constant 0 : index
    %c0_51 = arith.constant 0 : index
    %c96 = arith.constant 96 : index
    %116 = vector.load %arg4[%c0_50, %c0_51, %c96] : memref<2x2x358xf32, #tpu.memory_space<vmem>>, vector<1x2x256xf32>
    %117 = vector.shape_cast %116 : vector<1x2x256xf32> to vector<2x256xf32>
    %118 = vector.broadcast %115 : f32 to vector<2x256xf32>
    %119 = arith.mulf %118, %117 : vector<2x256xf32>
    %120 = arith.addf %114, %119 : vector<2x256xf32>
    %121 = vector.broadcast %57 : vector<1x256xf32> to vector<2x256xf32>
    %122 = arith.mulf %120, %121 : vector<2x256xf32>
    %123 = arith.addf %78, %122 : vector<2x256xf32>
    %c1_52 = arith.constant 1 : index
    %124 = memref.load %arg1[%c1_52] : memref<99xf32, #tpu.memory_space<smem>>
    %c0_53 = arith.constant 0 : index
    %c0_54 = arith.constant 0 : index
    %c1_55 = arith.constant 1 : index
    %125 = vector.load %arg4[%c0_53, %c0_54, %c1_55] : memref<2x2x358xf32, #tpu.memory_space<vmem>>, vector<1x2x256xf32>
    %126 = vector.shape_cast %125 : vector<1x2x256xf32> to vector<2x256xf32>
    %127 = vector.broadcast %124 : f32 to vector<2x256xf32>
    %128 = arith.mulf %127, %126 : vector<2x256xf32>
    %c8 = arith.constant 8 : index
    %129 = memref.load %arg1[%c8] : memref<99xf32, #tpu.memory_space<smem>>
    %c0_56 = arith.constant 0 : index
    %c0_57 = arith.constant 0 : index
    %c17 = arith.constant 17 : index
    %130 = vector.load %arg4[%c0_56, %c0_57, %c17] : memref<2x2x358xf32, #tpu.memory_space<vmem>>, vector<1x2x256xf32>
    %131 = vector.shape_cast %130 : vector<1x2x256xf32> to vector<2x256xf32>
    %132 = vector.broadcast %129 : f32 to vector<2x256xf32>
    %133 = arith.mulf %132, %131 : vector<2x256xf32>
    %134 = arith.addf %128, %133 : vector<2x256xf32>
    %c15 = arith.constant 15 : index
    %135 = memref.load %arg1[%c15] : memref<99xf32, #tpu.memory_space<smem>>
    %c0_58 = arith.constant 0 : index
    %c0_59 = arith.constant 0 : index
    %c33 = arith.constant 33 : index
    %136 = vector.load %arg4[%c0_58, %c0_59, %c33] : memref<2x2x358xf32, #tpu.memory_space<vmem>>, vector<1x2x256xf32>
    %137 = vector.shape_cast %136 : vector<1x2x256xf32> to vector<2x256xf32>
    %138 = vector.broadcast %135 : f32 to vector<2x256xf32>
    %139 = arith.mulf %138, %137 : vector<2x256xf32>
    %140 = arith.addf %134, %139 : vector<2x256xf32>
    %c22 = arith.constant 22 : index
    %141 = memref.load %arg1[%c22] : memref<99xf32, #tpu.memory_space<smem>>
    %c0_60 = arith.constant 0 : index
    %c0_61 = arith.constant 0 : index
    %c49 = arith.constant 49 : index
    %142 = vector.load %arg4[%c0_60, %c0_61, %c49] : memref<2x2x358xf32, #tpu.memory_space<vmem>>, vector<1x2x256xf32>
    %143 = vector.shape_cast %142 : vector<1x2x256xf32> to vector<2x256xf32>
    %144 = vector.broadcast %141 : f32 to vector<2x256xf32>
    %145 = arith.mulf %144, %143 : vector<2x256xf32>
    %146 = arith.addf %140, %145 : vector<2x256xf32>
    %c29 = arith.constant 29 : index
    %147 = memref.load %arg1[%c29] : memref<99xf32, #tpu.memory_space<smem>>
    %c0_62 = arith.constant 0 : index
    %c0_63 = arith.constant 0 : index
    %c65 = arith.constant 65 : index
    %148 = vector.load %arg4[%c0_62, %c0_63, %c65] : memref<2x2x358xf32, #tpu.memory_space<vmem>>, vector<1x2x256xf32>
    %149 = vector.shape_cast %148 : vector<1x2x256xf32> to vector<2x256xf32>
    %150 = vector.broadcast %147 : f32 to vector<2x256xf32>
    %151 = arith.mulf %150, %149 : vector<2x256xf32>
    %152 = arith.addf %146, %151 : vector<2x256xf32>
    %c36 = arith.constant 36 : index
    %153 = memref.load %arg1[%c36] : memref<99xf32, #tpu.memory_space<smem>>
    %c0_64 = arith.constant 0 : index
    %c0_65 = arith.constant 0 : index
    %c81 = arith.constant 81 : index
    %154 = vector.load %arg4[%c0_64, %c0_65, %c81] : memref<2x2x358xf32, #tpu.memory_space<vmem>>, vector<1x2x256xf32>
    %155 = vector.shape_cast %154 : vector<1x2x256xf32> to vector<2x256xf32>
    %156 = vector.broadcast %153 : f32 to vector<2x256xf32>
    %157 = arith.mulf %156, %155 : vector<2x256xf32>
    %158 = arith.addf %152, %157 : vector<2x256xf32>
    %c43 = arith.constant 43 : index
    %159 = memref.load %arg1[%c43] : memref<99xf32, #tpu.memory_space<smem>>
    %c0_66 = arith.constant 0 : index
    %c0_67 = arith.constant 0 : index
    %c97 = arith.constant 97 : index
    %160 = vector.load %arg4[%c0_66, %c0_67, %c97] : memref<2x2x358xf32, #tpu.memory_space<vmem>>, vector<1x2x256xf32>
    %161 = vector.shape_cast %160 : vector<1x2x256xf32> to vector<2x256xf32>
    %162 = vector.broadcast %159 : f32 to vector<2x256xf32>
    %163 = arith.mulf %162, %161 : vector<2x256xf32>
    %164 = arith.addf %158, %163 : vector<2x256xf32>
    %165 = vector.broadcast %61 : vector<1x256xf32> to vector<2x256xf32>
    %166 = arith.mulf %164, %165 : vector<2x256xf32>
    %167 = arith.addf %79, %166 : vector<2x256xf32>
    %c2 = arith.constant 2 : index
    %168 = memref.load %arg1[%c2] : memref<99xf32, #tpu.memory_space<smem>>
    %c0_68 = arith.constant 0 : index
    %c0_69 = arith.constant 0 : index
    %c2_70 = arith.constant 2 : index
    %169 = vector.load %arg4[%c0_68, %c0_69, %c2_70] : memref<2x2x358xf32, #tpu.memory_space<vmem>>, vector<1x2x256xf32>
    %170 = vector.shape_cast %169 : vector<1x2x256xf32> to vector<2x256xf32>
    %171 = vector.broadcast %168 : f32 to vector<2x256xf32>
    %172 = arith.mulf %171, %170 : vector<2x256xf32>
    %c9 = arith.constant 9 : index
    %173 = memref.load %arg1[%c9] : memref<99xf32, #tpu.memory_space<smem>>
    %c0_71 = arith.constant 0 : index
    %c0_72 = arith.constant 0 : index
    %c18 = arith.constant 18 : index
    %174 = vector.load %arg4[%c0_71, %c0_72, %c18] : memref<2x2x358xf32, #tpu.memory_space<vmem>>, vector<1x2x256xf32>
    %175 = vector.shape_cast %174 : vector<1x2x256xf32> to vector<2x256xf32>
    %176 = vector.broadcast %173 : f32 to vector<2x256xf32>
    %177 = arith.mulf %176, %175 : vector<2x256xf32>
    %178 = arith.addf %172, %177 : vector<2x256xf32>
    %c16_73 = arith.constant 16 : index
    %179 = memref.load %arg1[%c16_73] : memref<99xf32, #tpu.memory_space<smem>>
    %c0_74 = arith.constant 0 : index
    %c0_75 = arith.constant 0 : index
    %c34 = arith.constant 34 : index
    %180 = vector.load %arg4[%c0_74, %c0_75, %c34] : memref<2x2x358xf32, #tpu.memory_space<vmem>>, vector<1x2x256xf32>
    %181 = vector.shape_cast %180 : vector<1x2x256xf32> to vector<2x256xf32>
    %182 = vector.broadcast %179 : f32 to vector<2x256xf32>
    %183 = arith.mulf %182, %181 : vector<2x256xf32>
    %184 = arith.addf %178, %183 : vector<2x256xf32>
    %c23 = arith.constant 23 : index
    %185 = memref.load %arg1[%c23] : memref<99xf32, #tpu.memory_space<smem>>
    %c0_76 = arith.constant 0 : index
    %c0_77 = arith.constant 0 : index
    %c50 = arith.constant 50 : index
    %186 = vector.load %arg4[%c0_76, %c0_77, %c50] : memref<2x2x358xf32, #tpu.memory_space<vmem>>, vector<1x2x256xf32>
    %187 = vector.shape_cast %186 : vector<1x2x256xf32> to vector<2x256xf32>
    %188 = vector.broadcast %185 : f32 to vector<2x256xf32>
    %189 = arith.mulf %188, %187 : vector<2x256xf32>
    %190 = arith.addf %184, %189 : vector<2x256xf32>
    %c30 = arith.constant 30 : index
    %191 = memref.load %arg1[%c30] : memref<99xf32, #tpu.memory_space<smem>>
    %c0_78 = arith.constant 0 : index
    %c0_79 = arith.constant 0 : index
    %c66 = arith.constant 66 : index
    %192 = vector.load %arg4[%c0_78, %c0_79, %c66] : memref<2x2x358xf32, #tpu.memory_space<vmem>>, vector<1x2x256xf32>
    %193 = vector.shape_cast %192 : vector<1x2x256xf32> to vector<2x256xf32>
    %194 = vector.broadcast %191 : f32 to vector<2x256xf32>
    %195 = arith.mulf %194, %193 : vector<2x256xf32>
    %196 = arith.addf %190, %195 : vector<2x256xf32>
    %c37 = arith.constant 37 : index
    %197 = memref.load %arg1[%c37] : memref<99xf32, #tpu.memory_space<smem>>
    %c0_80 = arith.constant 0 : index
    %c0_81 = arith.constant 0 : index
    %c82 = arith.constant 82 : index
    %198 = vector.load %arg4[%c0_80, %c0_81, %c82] : memref<2x2x358xf32, #tpu.memory_space<vmem>>, vector<1x2x256xf32>
    %199 = vector.shape_cast %198 : vector<1x2x256xf32> to vector<2x256xf32>
    %200 = vector.broadcast %197 : f32 to vector<2x256xf32>
    %201 = arith.mulf %200, %199 : vector<2x256xf32>
    %202 = arith.addf %196, %201 : vector<2x256xf32>
    %c44 = arith.constant 44 : index
    %203 = memref.load %arg1[%c44] : memref<99xf32, #tpu.memory_space<smem>>
    %c0_82 = arith.constant 0 : index
    %c0_83 = arith.constant 0 : index
    %c98 = arith.constant 98 : index
    %204 = vector.load %arg4[%c0_82, %c0_83, %c98] : memref<2x2x358xf32, #tpu.memory_space<vmem>>, vector<1x2x256xf32>
    %205 = vector.shape_cast %204 : vector<1x2x256xf32> to vector<2x256xf32>
    %206 = vector.broadcast %203 : f32 to vector<2x256xf32>
    %207 = arith.mulf %206, %205 : vector<2x256xf32>
    %208 = arith.addf %202, %207 : vector<2x256xf32>
    %209 = vector.broadcast %65 : vector<1x256xf32> to vector<2x256xf32>
    %210 = arith.mulf %208, %209 : vector<2x256xf32>
    %211 = arith.addf %123, %210 : vector<2x256xf32>
    %c3 = arith.constant 3 : index
    %212 = memref.load %arg1[%c3] : memref<99xf32, #tpu.memory_space<smem>>
    %c0_84 = arith.constant 0 : index
    %c0_85 = arith.constant 0 : index
    %c3_86 = arith.constant 3 : index
    %213 = vector.load %arg4[%c0_84, %c0_85, %c3_86] : memref<2x2x358xf32, #tpu.memory_space<vmem>>, vector<1x2x256xf32>
    %214 = vector.shape_cast %213 : vector<1x2x256xf32> to vector<2x256xf32>
    %215 = vector.broadcast %212 : f32 to vector<2x256xf32>
    %216 = arith.mulf %215, %214 : vector<2x256xf32>
    %c10 = arith.constant 10 : index
    %217 = memref.load %arg1[%c10] : memref<99xf32, #tpu.memory_space<smem>>
    %c0_87 = arith.constant 0 : index
    %c0_88 = arith.constant 0 : index
    %c19 = arith.constant 19 : index
    %218 = vector.load %arg4[%c0_87, %c0_88, %c19] : memref<2x2x358xf32, #tpu.memory_space<vmem>>, vector<1x2x256xf32>
    %219 = vector.shape_cast %218 : vector<1x2x256xf32> to vector<2x256xf32>
    %220 = vector.broadcast %217 : f32 to vector<2x256xf32>
    %221 = arith.mulf %220, %219 : vector<2x256xf32>
    %222 = arith.addf %216, %221 : vector<2x256xf32>
    %c17_89 = arith.constant 17 : index
    %223 = memref.load %arg1[%c17_89] : memref<99xf32, #tpu.memory_space<smem>>
    %c0_90 = arith.constant 0 : index
    %c0_91 = arith.constant 0 : index
    %c35_92 = arith.constant 35 : index
    %224 = vector.load %arg4[%c0_90, %c0_91, %c35_92] : memref<2x2x358xf32, #tpu.memory_space<vmem>>, vector<1x2x256xf32>
    %225 = vector.shape_cast %224 : vector<1x2x256xf32> to vector<2x256xf32>
    %226 = vector.broadcast %223 : f32 to vector<2x256xf32>
    %227 = arith.mulf %226, %225 : vector<2x256xf32>
    %228 = arith.addf %222, %227 : vector<2x256xf32>
    %c24 = arith.constant 24 : index
    %229 = memref.load %arg1[%c24] : memref<99xf32, #tpu.memory_space<smem>>
    %c0_93 = arith.constant 0 : index
    %c0_94 = arith.constant 0 : index
    %c51_95 = arith.constant 51 : index
    %230 = vector.load %arg4[%c0_93, %c0_94, %c51_95] : memref<2x2x358xf32, #tpu.memory_space<vmem>>, vector<1x2x256xf32>
    %231 = vector.shape_cast %230 : vector<1x2x256xf32> to vector<2x256xf32>
    %232 = vector.broadcast %229 : f32 to vector<2x256xf32>
    %233 = arith.mulf %232, %231 : vector<2x256xf32>
    %234 = arith.addf %228, %233 : vector<2x256xf32>
    %c31 = arith.constant 31 : index
    %235 = memref.load %arg1[%c31] : memref<99xf32, #tpu.memory_space<smem>>
    %c0_96 = arith.constant 0 : index
    %c0_97 = arith.constant 0 : index
    %c67 = arith.constant 67 : index
    %236 = vector.load %arg4[%c0_96, %c0_97, %c67] : memref<2x2x358xf32, #tpu.memory_space<vmem>>, vector<1x2x256xf32>
    %237 = vector.shape_cast %236 : vector<1x2x256xf32> to vector<2x256xf32>
    %238 = vector.broadcast %235 : f32 to vector<2x256xf32>
    %239 = arith.mulf %238, %237 : vector<2x256xf32>
    %240 = arith.addf %234, %239 : vector<2x256xf32>
    %c38 = arith.constant 38 : index
    %241 = memref.load %arg1[%c38] : memref<99xf32, #tpu.memory_space<smem>>
    %c0_98 = arith.constant 0 : index
    %c0_99 = arith.constant 0 : index
    %c83 = arith.constant 83 : index
    %242 = vector.load %arg4[%c0_98, %c0_99, %c83] : memref<2x2x358xf32, #tpu.memory_space<vmem>>, vector<1x2x256xf32>
    %243 = vector.shape_cast %242 : vector<1x2x256xf32> to vector<2x256xf32>
    %244 = vector.broadcast %241 : f32 to vector<2x256xf32>
    %245 = arith.mulf %244, %243 : vector<2x256xf32>
    %246 = arith.addf %240, %245 : vector<2x256xf32>
    %c45 = arith.constant 45 : index
    %247 = memref.load %arg1[%c45] : memref<99xf32, #tpu.memory_space<smem>>
    %c0_100 = arith.constant 0 : index
    %c0_101 = arith.constant 0 : index
    %c99 = arith.constant 99 : index
    %248 = vector.load %arg4[%c0_100, %c0_101, %c99] : memref<2x2x358xf32, #tpu.memory_space<vmem>>, vector<1x2x256xf32>
    %249 = vector.shape_cast %248 : vector<1x2x256xf32> to vector<2x256xf32>
    %250 = vector.broadcast %247 : f32 to vector<2x256xf32>
    %251 = arith.mulf %250, %249 : vector<2x256xf32>
    %252 = arith.addf %246, %251 : vector<2x256xf32>
    %253 = arith.addf %167, %252 : vector<2x256xf32>
    %c4 = arith.constant 4 : index
    %254 = memref.load %arg1[%c4] : memref<99xf32, #tpu.memory_space<smem>>
    %c0_102 = arith.constant 0 : index
    %c0_103 = arith.constant 0 : index
    %c4_104 = arith.constant 4 : index
    %255 = vector.load %arg4[%c0_102, %c0_103, %c4_104] : memref<2x2x358xf32, #tpu.memory_space<vmem>>, vector<1x2x256xf32>
    %256 = vector.shape_cast %255 : vector<1x2x256xf32> to vector<2x256xf32>
    %257 = vector.broadcast %254 : f32 to vector<2x256xf32>
    %258 = arith.mulf %257, %256 : vector<2x256xf32>
    %c11 = arith.constant 11 : index
    %259 = memref.load %arg1[%c11] : memref<99xf32, #tpu.memory_space<smem>>
    %c0_105 = arith.constant 0 : index
    %c0_106 = arith.constant 0 : index
    %c20 = arith.constant 20 : index
    %260 = vector.load %arg4[%c0_105, %c0_106, %c20] : memref<2x2x358xf32, #tpu.memory_space<vmem>>, vector<1x2x256xf32>
    %261 = vector.shape_cast %260 : vector<1x2x256xf32> to vector<2x256xf32>
    %262 = vector.broadcast %259 : f32 to vector<2x256xf32>
    %263 = arith.mulf %262, %261 : vector<2x256xf32>
    %264 = arith.addf %258, %263 : vector<2x256xf32>
    %c18_107 = arith.constant 18 : index
    %265 = memref.load %arg1[%c18_107] : memref<99xf32, #tpu.memory_space<smem>>
    %c0_108 = arith.constant 0 : index
    %c0_109 = arith.constant 0 : index
    %c36_110 = arith.constant 36 : index
    %266 = vector.load %arg4[%c0_108, %c0_109, %c36_110] : memref<2x2x358xf32, #tpu.memory_space<vmem>>, vector<1x2x256xf32>
    %267 = vector.shape_cast %266 : vector<1x2x256xf32> to vector<2x256xf32>
    %268 = vector.broadcast %265 : f32 to vector<2x256xf32>
    %269 = arith.mulf %268, %267 : vector<2x256xf32>
    %270 = arith.addf %264, %269 : vector<2x256xf32>
    %c25 = arith.constant 25 : index
    %271 = memref.load %arg1[%c25] : memref<99xf32, #tpu.memory_space<smem>>
    %c0_111 = arith.constant 0 : index
    %c0_112 = arith.constant 0 : index
    %c52 = arith.constant 52 : index
    %272 = vector.load %arg4[%c0_111, %c0_112, %c52] : memref<2x2x358xf32, #tpu.memory_space<vmem>>, vector<1x2x256xf32>
    %273 = vector.shape_cast %272 : vector<1x2x256xf32> to vector<2x256xf32>
    %274 = vector.broadcast %271 : f32 to vector<2x256xf32>
    %275 = arith.mulf %274, %273 : vector<2x256xf32>
    %276 = arith.addf %270, %275 : vector<2x256xf32>
    %c32_113 = arith.constant 32 : index
    %277 = memref.load %arg1[%c32_113] : memref<99xf32, #tpu.memory_space<smem>>
    %c0_114 = arith.constant 0 : index
    %c0_115 = arith.constant 0 : index
    %c68 = arith.constant 68 : index
    %278 = vector.load %arg4[%c0_114, %c0_115, %c68] : memref<2x2x358xf32, #tpu.memory_space<vmem>>, vector<1x2x256xf32>
    %279 = vector.shape_cast %278 : vector<1x2x256xf32> to vector<2x256xf32>
    %280 = vector.broadcast %277 : f32 to vector<2x256xf32>
    %281 = arith.mulf %280, %279 : vector<2x256xf32>
    %282 = arith.addf %276, %281 : vector<2x256xf32>
    %c39 = arith.constant 39 : index
    %283 = memref.load %arg1[%c39] : memref<99xf32, #tpu.memory_space<smem>>
    %c0_116 = arith.constant 0 : index
    %c0_117 = arith.constant 0 : index
    %c84 = arith.constant 84 : index
    %284 = vector.load %arg4[%c0_116, %c0_117, %c84] : memref<2x2x358xf32, #tpu.memory_space<vmem>>, vector<1x2x256xf32>
    %285 = vector.shape_cast %284 : vector<1x2x256xf32> to vector<2x256xf32>
    %286 = vector.broadcast %283 : f32 to vector<2x256xf32>
    %287 = arith.mulf %286, %285 : vector<2x256xf32>
    %288 = arith.addf %282, %287 : vector<2x256xf32>
    %c46 = arith.constant 46 : index
    %289 = memref.load %arg1[%c46] : memref<99xf32, #tpu.memory_space<smem>>
    %c0_118 = arith.constant 0 : index
    %c0_119 = arith.constant 0 : index
    %c100 = arith.constant 100 : index
    %290 = vector.load %arg4[%c0_118, %c0_119, %c100] : memref<2x2x358xf32, #tpu.memory_space<vmem>>, vector<1x2x256xf32>
    %291 = vector.shape_cast %290 : vector<1x2x256xf32> to vector<2x256xf32>
    %292 = vector.broadcast %289 : f32 to vector<2x256xf32>
    %293 = arith.mulf %292, %291 : vector<2x256xf32>
    %294 = arith.addf %288, %293 : vector<2x256xf32>
    %295 = vector.broadcast %69 : vector<1x256xf32> to vector<2x256xf32>
    %296 = arith.mulf %294, %295 : vector<2x256xf32>
    %297 = arith.addf %211, %296 : vector<2x256xf32>
    %c5 = arith.constant 5 : index
    %298 = memref.load %arg1[%c5] : memref<99xf32, #tpu.memory_space<smem>>
    %c0_120 = arith.constant 0 : index
    %c0_121 = arith.constant 0 : index
    %c5_122 = arith.constant 5 : index
    %299 = vector.load %arg4[%c0_120, %c0_121, %c5_122] : memref<2x2x358xf32, #tpu.memory_space<vmem>>, vector<1x2x256xf32>
    %300 = vector.shape_cast %299 : vector<1x2x256xf32> to vector<2x256xf32>
    %301 = vector.broadcast %298 : f32 to vector<2x256xf32>
    %302 = arith.mulf %301, %300 : vector<2x256xf32>
    %c12 = arith.constant 12 : index
    %303 = memref.load %arg1[%c12] : memref<99xf32, #tpu.memory_space<smem>>
    %c0_123 = arith.constant 0 : index
    %c0_124 = arith.constant 0 : index
    %c21_125 = arith.constant 21 : index
    %304 = vector.load %arg4[%c0_123, %c0_124, %c21_125] : memref<2x2x358xf32, #tpu.memory_space<vmem>>, vector<1x2x256xf32>
    %305 = vector.shape_cast %304 : vector<1x2x256xf32> to vector<2x256xf32>
    %306 = vector.broadcast %303 : f32 to vector<2x256xf32>
    %307 = arith.mulf %306, %305 : vector<2x256xf32>
    %308 = arith.addf %302, %307 : vector<2x256xf32>
    %c19_126 = arith.constant 19 : index
    %309 = memref.load %arg1[%c19_126] : memref<99xf32, #tpu.memory_space<smem>>
    %c0_127 = arith.constant 0 : index
    %c0_128 = arith.constant 0 : index
    %c37_129 = arith.constant 37 : index
    %310 = vector.load %arg4[%c0_127, %c0_128, %c37_129] : memref<2x2x358xf32, #tpu.memory_space<vmem>>, vector<1x2x256xf32>
    %311 = vector.shape_cast %310 : vector<1x2x256xf32> to vector<2x256xf32>
    %312 = vector.broadcast %309 : f32 to vector<2x256xf32>
    %313 = arith.mulf %312, %311 : vector<2x256xf32>
    %314 = arith.addf %308, %313 : vector<2x256xf32>
    %c26 = arith.constant 26 : index
    %315 = memref.load %arg1[%c26] : memref<99xf32, #tpu.memory_space<smem>>
    %c0_130 = arith.constant 0 : index
    %c0_131 = arith.constant 0 : index
    %c53 = arith.constant 53 : index
    %316 = vector.load %arg4[%c0_130, %c0_131, %c53] : memref<2x2x358xf32, #tpu.memory_space<vmem>>, vector<1x2x256xf32>
    %317 = vector.shape_cast %316 : vector<1x2x256xf32> to vector<2x256xf32>
    %318 = vector.broadcast %315 : f32 to vector<2x256xf32>
    %319 = arith.mulf %318, %317 : vector<2x256xf32>
    %320 = arith.addf %314, %319 : vector<2x256xf32>
    %c33_132 = arith.constant 33 : index
    %321 = memref.load %arg1[%c33_132] : memref<99xf32, #tpu.memory_space<smem>>
    %c0_133 = arith.constant 0 : index
    %c0_134 = arith.constant 0 : index
    %c69 = arith.constant 69 : index
    %322 = vector.load %arg4[%c0_133, %c0_134, %c69] : memref<2x2x358xf32, #tpu.memory_space<vmem>>, vector<1x2x256xf32>
    %323 = vector.shape_cast %322 : vector<1x2x256xf32> to vector<2x256xf32>
    %324 = vector.broadcast %321 : f32 to vector<2x256xf32>
    %325 = arith.mulf %324, %323 : vector<2x256xf32>
    %326 = arith.addf %320, %325 : vector<2x256xf32>
    %c40 = arith.constant 40 : index
    %327 = memref.load %arg1[%c40] : memref<99xf32, #tpu.memory_space<smem>>
    %c0_135 = arith.constant 0 : index
    %c0_136 = arith.constant 0 : index
    %c85 = arith.constant 85 : index
    %328 = vector.load %arg4[%c0_135, %c0_136, %c85] : memref<2x2x358xf32, #tpu.memory_space<vmem>>, vector<1x2x256xf32>
    %329 = vector.shape_cast %328 : vector<1x2x256xf32> to vector<2x256xf32>
    %330 = vector.broadcast %327 : f32 to vector<2x256xf32>
    %331 = arith.mulf %330, %329 : vector<2x256xf32>
    %332 = arith.addf %326, %331 : vector<2x256xf32>
    %c47 = arith.constant 47 : index
    %333 = memref.load %arg1[%c47] : memref<99xf32, #tpu.memory_space<smem>>
    %c0_137 = arith.constant 0 : index
    %c0_138 = arith.constant 0 : index
    %c101 = arith.constant 101 : index
    %334 = vector.load %arg4[%c0_137, %c0_138, %c101] : memref<2x2x358xf32, #tpu.memory_space<vmem>>, vector<1x2x256xf32>
    %335 = vector.shape_cast %334 : vector<1x2x256xf32> to vector<2x256xf32>
    %336 = vector.broadcast %333 : f32 to vector<2x256xf32>
    %337 = arith.mulf %336, %335 : vector<2x256xf32>
    %338 = arith.addf %332, %337 : vector<2x256xf32>
    %339 = vector.broadcast %73 : vector<1x256xf32> to vector<2x256xf32>
    %340 = arith.mulf %338, %339 : vector<2x256xf32>
    %341 = arith.addf %253, %340 : vector<2x256xf32>
    %c6 = arith.constant 6 : index
    %342 = memref.load %arg1[%c6] : memref<99xf32, #tpu.memory_space<smem>>
    %c0_139 = arith.constant 0 : index
    %c0_140 = arith.constant 0 : index
    %c6_141 = arith.constant 6 : index
    %343 = vector.load %arg4[%c0_139, %c0_140, %c6_141] : memref<2x2x358xf32, #tpu.memory_space<vmem>>, vector<1x2x256xf32>
    %344 = vector.shape_cast %343 : vector<1x2x256xf32> to vector<2x256xf32>
    %345 = vector.broadcast %342 : f32 to vector<2x256xf32>
    %346 = arith.mulf %345, %344 : vector<2x256xf32>
    %c13 = arith.constant 13 : index
    %347 = memref.load %arg1[%c13] : memref<99xf32, #tpu.memory_space<smem>>
    %c0_142 = arith.constant 0 : index
    %c0_143 = arith.constant 0 : index
    %c22_144 = arith.constant 22 : index
    %348 = vector.load %arg4[%c0_142, %c0_143, %c22_144] : memref<2x2x358xf32, #tpu.memory_space<vmem>>, vector<1x2x256xf32>
    %349 = vector.shape_cast %348 : vector<1x2x256xf32> to vector<2x256xf32>
    %350 = vector.broadcast %347 : f32 to vector<2x256xf32>
    %351 = arith.mulf %350, %349 : vector<2x256xf32>
    %352 = arith.addf %346, %351 : vector<2x256xf32>
    %c20_145 = arith.constant 20 : index
    %353 = memref.load %arg1[%c20_145] : memref<99xf32, #tpu.memory_space<smem>>
    %c0_146 = arith.constant 0 : index
    %c0_147 = arith.constant 0 : index
    %c38_148 = arith.constant 38 : index
    %354 = vector.load %arg4[%c0_146, %c0_147, %c38_148] : memref<2x2x358xf32, #tpu.memory_space<vmem>>, vector<1x2x256xf32>
    %355 = vector.shape_cast %354 : vector<1x2x256xf32> to vector<2x256xf32>
    %356 = vector.broadcast %353 : f32 to vector<2x256xf32>
    %357 = arith.mulf %356, %355 : vector<2x256xf32>
    %358 = arith.addf %352, %357 : vector<2x256xf32>
    %c27 = arith.constant 27 : index
    %359 = memref.load %arg1[%c27] : memref<99xf32, #tpu.memory_space<smem>>
    %c0_149 = arith.constant 0 : index
    %c0_150 = arith.constant 0 : index
    %c54 = arith.constant 54 : index
    %360 = vector.load %arg4[%c0_149, %c0_150, %c54] : memref<2x2x358xf32, #tpu.memory_space<vmem>>, vector<1x2x256xf32>
    %361 = vector.shape_cast %360 : vector<1x2x256xf32> to vector<2x256xf32>
    %362 = vector.broadcast %359 : f32 to vector<2x256xf32>
    %363 = arith.mulf %362, %361 : vector<2x256xf32>
    %364 = arith.addf %358, %363 : vector<2x256xf32>
    %c34_151 = arith.constant 34 : index
    %365 = memref.load %arg1[%c34_151] : memref<99xf32, #tpu.memory_space<smem>>
    %c0_152 = arith.constant 0 : index
    %c0_153 = arith.constant 0 : index
    %c70 = arith.constant 70 : index
    %366 = vector.load %arg4[%c0_152, %c0_153, %c70] : memref<2x2x358xf32, #tpu.memory_space<vmem>>, vector<1x2x256xf32>
    %367 = vector.shape_cast %366 : vector<1x2x256xf32> to vector<2x256xf32>
    %368 = vector.broadcast %365 : f32 to vector<2x256xf32>
    %369 = arith.mulf %368, %367 : vector<2x256xf32>
    %370 = arith.addf %364, %369 : vector<2x256xf32>
    %c41 = arith.constant 41 : index
    %371 = memref.load %arg1[%c41] : memref<99xf32, #tpu.memory_space<smem>>
    %c0_154 = arith.constant 0 : index
    %c0_155 = arith.constant 0 : index
    %c86 = arith.constant 86 : index
    %372 = vector.load %arg4[%c0_154, %c0_155, %c86] : memref<2x2x358xf32, #tpu.memory_space<vmem>>, vector<1x2x256xf32>
    %373 = vector.shape_cast %372 : vector<1x2x256xf32> to vector<2x256xf32>
    %374 = vector.broadcast %371 : f32 to vector<2x256xf32>
    %375 = arith.mulf %374, %373 : vector<2x256xf32>
    %376 = arith.addf %370, %375 : vector<2x256xf32>
    %c48_156 = arith.constant 48 : index
    %377 = memref.load %arg1[%c48_156] : memref<99xf32, #tpu.memory_space<smem>>
    %c0_157 = arith.constant 0 : index
    %c0_158 = arith.constant 0 : index
    %c102 = arith.constant 102 : index
    %378 = vector.load %arg4[%c0_157, %c0_158, %c102] : memref<2x2x358xf32, #tpu.memory_space<vmem>>, vector<1x2x256xf32>
    %379 = vector.shape_cast %378 : vector<1x2x256xf32> to vector<2x256xf32>
    %380 = vector.broadcast %377 : f32 to vector<2x256xf32>
    %381 = arith.mulf %380, %379 : vector<2x256xf32>
    %382 = arith.addf %376, %381 : vector<2x256xf32>
    %383 = vector.broadcast %77 : vector<1x256xf32> to vector<2x256xf32>
    %384 = arith.mulf %382, %383 : vector<2x256xf32>
    %385 = arith.addf %297, %384 : vector<2x256xf32>
    %c49_159 = arith.constant 49 : index
    %386 = memref.load %arg1[%c49_159] : memref<99xf32, #tpu.memory_space<smem>>
    %c1_160 = arith.constant 1 : index
    %c0_161 = arith.constant 0 : index
    %c0_162 = arith.constant 0 : index
    %387 = vector.load %arg4[%c1_160, %c0_161, %c0_162] : memref<2x2x358xf32, #tpu.memory_space<vmem>>, vector<1x2x256xf32>
    %388 = vector.shape_cast %387 : vector<1x2x256xf32> to vector<2x256xf32>
    %389 = vector.broadcast %386 : f32 to vector<2x256xf32>
    %390 = arith.mulf %389, %388 : vector<2x256xf32>
    %c56 = arith.constant 56 : index
    %391 = memref.load %arg1[%c56] : memref<99xf32, #tpu.memory_space<smem>>
    %c1_163 = arith.constant 1 : index
    %c0_164 = arith.constant 0 : index
    %c16_165 = arith.constant 16 : index
    %392 = vector.load %arg4[%c1_163, %c0_164, %c16_165] : memref<2x2x358xf32, #tpu.memory_space<vmem>>, vector<1x2x256xf32>
    %393 = vector.shape_cast %392 : vector<1x2x256xf32> to vector<2x256xf32>
    %394 = vector.broadcast %391 : f32 to vector<2x256xf32>
    %395 = arith.mulf %394, %393 : vector<2x256xf32>
    %396 = arith.addf %390, %395 : vector<2x256xf32>
    %c63 = arith.constant 63 : index
    %397 = memref.load %arg1[%c63] : memref<99xf32, #tpu.memory_space<smem>>
    %c1_166 = arith.constant 1 : index
    %c0_167 = arith.constant 0 : index
    %c32_168 = arith.constant 32 : index
    %398 = vector.load %arg4[%c1_166, %c0_167, %c32_168] : memref<2x2x358xf32, #tpu.memory_space<vmem>>, vector<1x2x256xf32>
    %399 = vector.shape_cast %398 : vector<1x2x256xf32> to vector<2x256xf32>
    %400 = vector.broadcast %397 : f32 to vector<2x256xf32>
    %401 = arith.mulf %400, %399 : vector<2x256xf32>
    %402 = arith.addf %396, %401 : vector<2x256xf32>
    %c70_169 = arith.constant 70 : index
    %403 = memref.load %arg1[%c70_169] : memref<99xf32, #tpu.memory_space<smem>>
    %c1_170 = arith.constant 1 : index
    %c0_171 = arith.constant 0 : index
    %c48_172 = arith.constant 48 : index
    %404 = vector.load %arg4[%c1_170, %c0_171, %c48_172] : memref<2x2x358xf32, #tpu.memory_space<vmem>>, vector<1x2x256xf32>
    %405 = vector.shape_cast %404 : vector<1x2x256xf32> to vector<2x256xf32>
    %406 = vector.broadcast %403 : f32 to vector<2x256xf32>
    %407 = arith.mulf %406, %405 : vector<2x256xf32>
    %408 = arith.addf %402, %407 : vector<2x256xf32>
    %c77 = arith.constant 77 : index
    %409 = memref.load %arg1[%c77] : memref<99xf32, #tpu.memory_space<smem>>
    %c1_173 = arith.constant 1 : index
    %c0_174 = arith.constant 0 : index
    %c64_175 = arith.constant 64 : index
    %410 = vector.load %arg4[%c1_173, %c0_174, %c64_175] : memref<2x2x358xf32, #tpu.memory_space<vmem>>, vector<1x2x256xf32>
    %411 = vector.shape_cast %410 : vector<1x2x256xf32> to vector<2x256xf32>
    %412 = vector.broadcast %409 : f32 to vector<2x256xf32>
    %413 = arith.mulf %412, %411 : vector<2x256xf32>
    %414 = arith.addf %408, %413 : vector<2x256xf32>
    %c84_176 = arith.constant 84 : index
    %415 = memref.load %arg1[%c84_176] : memref<99xf32, #tpu.memory_space<smem>>
    %c1_177 = arith.constant 1 : index
    %c0_178 = arith.constant 0 : index
    %c80_179 = arith.constant 80 : index
    %416 = vector.load %arg4[%c1_177, %c0_178, %c80_179] : memref<2x2x358xf32, #tpu.memory_space<vmem>>, vector<1x2x256xf32>
    %417 = vector.shape_cast %416 : vector<1x2x256xf32> to vector<2x256xf32>
    %418 = vector.broadcast %415 : f32 to vector<2x256xf32>
    %419 = arith.mulf %418, %417 : vector<2x256xf32>
    %420 = arith.addf %414, %419 : vector<2x256xf32>
    %c91 = arith.constant 91 : index
    %421 = memref.load %arg1[%c91] : memref<99xf32, #tpu.memory_space<smem>>
    %c1_180 = arith.constant 1 : index
    %c0_181 = arith.constant 0 : index
    %c96_182 = arith.constant 96 : index
    %422 = vector.load %arg4[%c1_180, %c0_181, %c96_182] : memref<2x2x358xf32, #tpu.memory_space<vmem>>, vector<1x2x256xf32>
    %423 = vector.shape_cast %422 : vector<1x2x256xf32> to vector<2x256xf32>
    %424 = vector.broadcast %421 : f32 to vector<2x256xf32>
    %425 = arith.mulf %424, %423 : vector<2x256xf32>
    %426 = arith.addf %420, %425 : vector<2x256xf32>
    %427 = vector.broadcast %57 : vector<1x256xf32> to vector<2x256xf32>
    %428 = arith.mulf %426, %427 : vector<2x256xf32>
    %429 = arith.addf %385, %428 : vector<2x256xf32>
    %c50_183 = arith.constant 50 : index
    %430 = memref.load %arg1[%c50_183] : memref<99xf32, #tpu.memory_space<smem>>
    %c1_184 = arith.constant 1 : index
    %c0_185 = arith.constant 0 : index
    %c1_186 = arith.constant 1 : index
    %431 = vector.load %arg4[%c1_184, %c0_185, %c1_186] : memref<2x2x358xf32, #tpu.memory_space<vmem>>, vector<1x2x256xf32>
    %432 = vector.shape_cast %431 : vector<1x2x256xf32> to vector<2x256xf32>
    %433 = vector.broadcast %430 : f32 to vector<2x256xf32>
    %434 = arith.mulf %433, %432 : vector<2x256xf32>
    %c57 = arith.constant 57 : index
    %435 = memref.load %arg1[%c57] : memref<99xf32, #tpu.memory_space<smem>>
    %c1_187 = arith.constant 1 : index
    %c0_188 = arith.constant 0 : index
    %c17_189 = arith.constant 17 : index
    %436 = vector.load %arg4[%c1_187, %c0_188, %c17_189] : memref<2x2x358xf32, #tpu.memory_space<vmem>>, vector<1x2x256xf32>
    %437 = vector.shape_cast %436 : vector<1x2x256xf32> to vector<2x256xf32>
    %438 = vector.broadcast %435 : f32 to vector<2x256xf32>
    %439 = arith.mulf %438, %437 : vector<2x256xf32>
    %440 = arith.addf %434, %439 : vector<2x256xf32>
    %c64_190 = arith.constant 64 : index
    %441 = memref.load %arg1[%c64_190] : memref<99xf32, #tpu.memory_space<smem>>
    %c1_191 = arith.constant 1 : index
    %c0_192 = arith.constant 0 : index
    %c33_193 = arith.constant 33 : index
    %442 = vector.load %arg4[%c1_191, %c0_192, %c33_193] : memref<2x2x358xf32, #tpu.memory_space<vmem>>, vector<1x2x256xf32>
    %443 = vector.shape_cast %442 : vector<1x2x256xf32> to vector<2x256xf32>
    %444 = vector.broadcast %441 : f32 to vector<2x256xf32>
    %445 = arith.mulf %444, %443 : vector<2x256xf32>
    %446 = arith.addf %440, %445 : vector<2x256xf32>
    %c71 = arith.constant 71 : index
    %447 = memref.load %arg1[%c71] : memref<99xf32, #tpu.memory_space<smem>>
    %c1_194 = arith.constant 1 : index
    %c0_195 = arith.constant 0 : index
    %c49_196 = arith.constant 49 : index
    %448 = vector.load %arg4[%c1_194, %c0_195, %c49_196] : memref<2x2x358xf32, #tpu.memory_space<vmem>>, vector<1x2x256xf32>
    %449 = vector.shape_cast %448 : vector<1x2x256xf32> to vector<2x256xf32>
    %450 = vector.broadcast %447 : f32 to vector<2x256xf32>
    %451 = arith.mulf %450, %449 : vector<2x256xf32>
    %452 = arith.addf %446, %451 : vector<2x256xf32>
    %c78 = arith.constant 78 : index
    %453 = memref.load %arg1[%c78] : memref<99xf32, #tpu.memory_space<smem>>
    %c1_197 = arith.constant 1 : index
    %c0_198 = arith.constant 0 : index
    %c65_199 = arith.constant 65 : index
    %454 = vector.load %arg4[%c1_197, %c0_198, %c65_199] : memref<2x2x358xf32, #tpu.memory_space<vmem>>, vector<1x2x256xf32>
    %455 = vector.shape_cast %454 : vector<1x2x256xf32> to vector<2x256xf32>
    %456 = vector.broadcast %453 : f32 to vector<2x256xf32>
    %457 = arith.mulf %456, %455 : vector<2x256xf32>
    %458 = arith.addf %452, %457 : vector<2x256xf32>
    %c85_200 = arith.constant 85 : index
    %459 = memref.load %arg1[%c85_200] : memref<99xf32, #tpu.memory_space<smem>>
    %c1_201 = arith.constant 1 : index
    %c0_202 = arith.constant 0 : index
    %c81_203 = arith.constant 81 : index
    %460 = vector.load %arg4[%c1_201, %c0_202, %c81_203] : memref<2x2x358xf32, #tpu.memory_space<vmem>>, vector<1x2x256xf32>
    %461 = vector.shape_cast %460 : vector<1x2x256xf32> to vector<2x256xf32>
    %462 = vector.broadcast %459 : f32 to vector<2x256xf32>
    %463 = arith.mulf %462, %461 : vector<2x256xf32>
    %464 = arith.addf %458, %463 : vector<2x256xf32>
    %c92 = arith.constant 92 : index
    %465 = memref.load %arg1[%c92] : memref<99xf32, #tpu.memory_space<smem>>
    %c1_204 = arith.constant 1 : index
    %c0_205 = arith.constant 0 : index
    %c97_206 = arith.constant 97 : index
    %466 = vector.load %arg4[%c1_204, %c0_205, %c97_206] : memref<2x2x358xf32, #tpu.memory_space<vmem>>, vector<1x2x256xf32>
    %467 = vector.shape_cast %466 : vector<1x2x256xf32> to vector<2x256xf32>
    %468 = vector.broadcast %465 : f32 to vector<2x256xf32>
    %469 = arith.mulf %468, %467 : vector<2x256xf32>
    %470 = arith.addf %464, %469 : vector<2x256xf32>
    %471 = vector.broadcast %61 : vector<1x256xf32> to vector<2x256xf32>
    %472 = arith.mulf %470, %471 : vector<2x256xf32>
    %473 = arith.addf %341, %472 : vector<2x256xf32>
    %c51_207 = arith.constant 51 : index
    %474 = memref.load %arg1[%c51_207] : memref<99xf32, #tpu.memory_space<smem>>
    %c1_208 = arith.constant 1 : index
    %c0_209 = arith.constant 0 : index
    %c2_210 = arith.constant 2 : index
    %475 = vector.load %arg4[%c1_208, %c0_209, %c2_210] : memref<2x2x358xf32, #tpu.memory_space<vmem>>, vector<1x2x256xf32>
    %476 = vector.shape_cast %475 : vector<1x2x256xf32> to vector<2x256xf32>
    %477 = vector.broadcast %474 : f32 to vector<2x256xf32>
    %478 = arith.mulf %477, %476 : vector<2x256xf32>
    %c58 = arith.constant 58 : index
    %479 = memref.load %arg1[%c58] : memref<99xf32, #tpu.memory_space<smem>>
    %c1_211 = arith.constant 1 : index
    %c0_212 = arith.constant 0 : index
    %c18_213 = arith.constant 18 : index
    %480 = vector.load %arg4[%c1_211, %c0_212, %c18_213] : memref<2x2x358xf32, #tpu.memory_space<vmem>>, vector<1x2x256xf32>
    %481 = vector.shape_cast %480 : vector<1x2x256xf32> to vector<2x256xf32>
    %482 = vector.broadcast %479 : f32 to vector<2x256xf32>
    %483 = arith.mulf %482, %481 : vector<2x256xf32>
    %484 = arith.addf %478, %483 : vector<2x256xf32>
    %c65_214 = arith.constant 65 : index
    %485 = memref.load %arg1[%c65_214] : memref<99xf32, #tpu.memory_space<smem>>
    %c1_215 = arith.constant 1 : index
    %c0_216 = arith.constant 0 : index
    %c34_217 = arith.constant 34 : index
    %486 = vector.load %arg4[%c1_215, %c0_216, %c34_217] : memref<2x2x358xf32, #tpu.memory_space<vmem>>, vector<1x2x256xf32>
    %487 = vector.shape_cast %486 : vector<1x2x256xf32> to vector<2x256xf32>
    %488 = vector.broadcast %485 : f32 to vector<2x256xf32>
    %489 = arith.mulf %488, %487 : vector<2x256xf32>
    %490 = arith.addf %484, %489 : vector<2x256xf32>
    %c72 = arith.constant 72 : index
    %491 = memref.load %arg1[%c72] : memref<99xf32, #tpu.memory_space<smem>>
    %c1_218 = arith.constant 1 : index
    %c0_219 = arith.constant 0 : index
    %c50_220 = arith.constant 50 : index
    %492 = vector.load %arg4[%c1_218, %c0_219, %c50_220] : memref<2x2x358xf32, #tpu.memory_space<vmem>>, vector<1x2x256xf32>
    %493 = vector.shape_cast %492 : vector<1x2x256xf32> to vector<2x256xf32>
    %494 = vector.broadcast %491 : f32 to vector<2x256xf32>
    %495 = arith.mulf %494, %493 : vector<2x256xf32>
    %496 = arith.addf %490, %495 : vector<2x256xf32>
    %c79 = arith.constant 79 : index
    %497 = memref.load %arg1[%c79] : memref<99xf32, #tpu.memory_space<smem>>
    %c1_221 = arith.constant 1 : index
    %c0_222 = arith.constant 0 : index
    %c66_223 = arith.constant 66 : index
    %498 = vector.load %arg4[%c1_221, %c0_222, %c66_223] : memref<2x2x358xf32, #tpu.memory_space<vmem>>, vector<1x2x256xf32>
    %499 = vector.shape_cast %498 : vector<1x2x256xf32> to vector<2x256xf32>
    %500 = vector.broadcast %497 : f32 to vector<2x256xf32>
    %501 = arith.mulf %500, %499 : vector<2x256xf32>
    %502 = arith.addf %496, %501 : vector<2x256xf32>
    %c86_224 = arith.constant 86 : index
    %503 = memref.load %arg1[%c86_224] : memref<99xf32, #tpu.memory_space<smem>>
    %c1_225 = arith.constant 1 : index
    %c0_226 = arith.constant 0 : index
    %c82_227 = arith.constant 82 : index
    %504 = vector.load %arg4[%c1_225, %c0_226, %c82_227] : memref<2x2x358xf32, #tpu.memory_space<vmem>>, vector<1x2x256xf32>
    %505 = vector.shape_cast %504 : vector<1x2x256xf32> to vector<2x256xf32>
    %506 = vector.broadcast %503 : f32 to vector<2x256xf32>
    %507 = arith.mulf %506, %505 : vector<2x256xf32>
    %508 = arith.addf %502, %507 : vector<2x256xf32>
    %c93 = arith.constant 93 : index
    %509 = memref.load %arg1[%c93] : memref<99xf32, #tpu.memory_space<smem>>
    %c1_228 = arith.constant 1 : index
    %c0_229 = arith.constant 0 : index
    %c98_230 = arith.constant 98 : index
    %510 = vector.load %arg4[%c1_228, %c0_229, %c98_230] : memref<2x2x358xf32, #tpu.memory_space<vmem>>, vector<1x2x256xf32>
    %511 = vector.shape_cast %510 : vector<1x2x256xf32> to vector<2x256xf32>
    %512 = vector.broadcast %509 : f32 to vector<2x256xf32>
    %513 = arith.mulf %512, %511 : vector<2x256xf32>
    %514 = arith.addf %508, %513 : vector<2x256xf32>
    %515 = vector.broadcast %65 : vector<1x256xf32> to vector<2x256xf32>
    %516 = arith.mulf %514, %515 : vector<2x256xf32>
    %517 = arith.addf %429, %516 : vector<2x256xf32>
    %c52_231 = arith.constant 52 : index
    %518 = memref.load %arg1[%c52_231] : memref<99xf32, #tpu.memory_space<smem>>
    %c1_232 = arith.constant 1 : index
    %c0_233 = arith.constant 0 : index
    %c3_234 = arith.constant 3 : index
    %519 = vector.load %arg4[%c1_232, %c0_233, %c3_234] : memref<2x2x358xf32, #tpu.memory_space<vmem>>, vector<1x2x256xf32>
    %520 = vector.shape_cast %519 : vector<1x2x256xf32> to vector<2x256xf32>
    %521 = vector.broadcast %518 : f32 to vector<2x256xf32>
    %522 = arith.mulf %521, %520 : vector<2x256xf32>
    %c59 = arith.constant 59 : index
    %523 = memref.load %arg1[%c59] : memref<99xf32, #tpu.memory_space<smem>>
    %c1_235 = arith.constant 1 : index
    %c0_236 = arith.constant 0 : index
    %c19_237 = arith.constant 19 : index
    %524 = vector.load %arg4[%c1_235, %c0_236, %c19_237] : memref<2x2x358xf32, #tpu.memory_space<vmem>>, vector<1x2x256xf32>
    %525 = vector.shape_cast %524 : vector<1x2x256xf32> to vector<2x256xf32>
    %526 = vector.broadcast %523 : f32 to vector<2x256xf32>
    %527 = arith.mulf %526, %525 : vector<2x256xf32>
    %528 = arith.addf %522, %527 : vector<2x256xf32>
    %c66_238 = arith.constant 66 : index
    %529 = memref.load %arg1[%c66_238] : memref<99xf32, #tpu.memory_space<smem>>
    %c1_239 = arith.constant 1 : index
    %c0_240 = arith.constant 0 : index
    %c35_241 = arith.constant 35 : index
    %530 = vector.load %arg4[%c1_239, %c0_240, %c35_241] : memref<2x2x358xf32, #tpu.memory_space<vmem>>, vector<1x2x256xf32>
    %531 = vector.shape_cast %530 : vector<1x2x256xf32> to vector<2x256xf32>
    %532 = vector.broadcast %529 : f32 to vector<2x256xf32>
    %533 = arith.mulf %532, %531 : vector<2x256xf32>
    %534 = arith.addf %528, %533 : vector<2x256xf32>
    %c73 = arith.constant 73 : index
    %535 = memref.load %arg1[%c73] : memref<99xf32, #tpu.memory_space<smem>>
    %c1_242 = arith.constant 1 : index
    %c0_243 = arith.constant 0 : index
    %c51_244 = arith.constant 51 : index
    %536 = vector.load %arg4[%c1_242, %c0_243, %c51_244] : memref<2x2x358xf32, #tpu.memory_space<vmem>>, vector<1x2x256xf32>
    %537 = vector.shape_cast %536 : vector<1x2x256xf32> to vector<2x256xf32>
    %538 = vector.broadcast %535 : f32 to vector<2x256xf32>
    %539 = arith.mulf %538, %537 : vector<2x256xf32>
    %540 = arith.addf %534, %539 : vector<2x256xf32>
    %c80_245 = arith.constant 80 : index
    %541 = memref.load %arg1[%c80_245] : memref<99xf32, #tpu.memory_space<smem>>
    %c1_246 = arith.constant 1 : index
    %c0_247 = arith.constant 0 : index
    %c67_248 = arith.constant 67 : index
    %542 = vector.load %arg4[%c1_246, %c0_247, %c67_248] : memref<2x2x358xf32, #tpu.memory_space<vmem>>, vector<1x2x256xf32>
    %543 = vector.shape_cast %542 : vector<1x2x256xf32> to vector<2x256xf32>
    %544 = vector.broadcast %541 : f32 to vector<2x256xf32>
    %545 = arith.mulf %544, %543 : vector<2x256xf32>
    %546 = arith.addf %540, %545 : vector<2x256xf32>
    %c87 = arith.constant 87 : index
    %547 = memref.load %arg1[%c87] : memref<99xf32, #tpu.memory_space<smem>>
    %c1_249 = arith.constant 1 : index
    %c0_250 = arith.constant 0 : index
    %c83_251 = arith.constant 83 : index
    %548 = vector.load %arg4[%c1_249, %c0_250, %c83_251] : memref<2x2x358xf32, #tpu.memory_space<vmem>>, vector<1x2x256xf32>
    %549 = vector.shape_cast %548 : vector<1x2x256xf32> to vector<2x256xf32>
    %550 = vector.broadcast %547 : f32 to vector<2x256xf32>
    %551 = arith.mulf %550, %549 : vector<2x256xf32>
    %552 = arith.addf %546, %551 : vector<2x256xf32>
    %c94 = arith.constant 94 : index
    %553 = memref.load %arg1[%c94] : memref<99xf32, #tpu.memory_space<smem>>
    %c1_252 = arith.constant 1 : index
    %c0_253 = arith.constant 0 : index
    %c99_254 = arith.constant 99 : index
    %554 = vector.load %arg4[%c1_252, %c0_253, %c99_254] : memref<2x2x358xf32, #tpu.memory_space<vmem>>, vector<1x2x256xf32>
    %555 = vector.shape_cast %554 : vector<1x2x256xf32> to vector<2x256xf32>
    %556 = vector.broadcast %553 : f32 to vector<2x256xf32>
    %557 = arith.mulf %556, %555 : vector<2x256xf32>
    %558 = arith.addf %552, %557 : vector<2x256xf32>
    %559 = arith.addf %473, %558 : vector<2x256xf32>
    %c53_255 = arith.constant 53 : index
    %560 = memref.load %arg1[%c53_255] : memref<99xf32, #tpu.memory_space<smem>>
    %c1_256 = arith.constant 1 : index
    %c0_257 = arith.constant 0 : index
    %c4_258 = arith.constant 4 : index
    %561 = vector.load %arg4[%c1_256, %c0_257, %c4_258] : memref<2x2x358xf32, #tpu.memory_space<vmem>>, vector<1x2x256xf32>
    %562 = vector.shape_cast %561 : vector<1x2x256xf32> to vector<2x256xf32>
    %563 = vector.broadcast %560 : f32 to vector<2x256xf32>
    %564 = arith.mulf %563, %562 : vector<2x256xf32>
    %c60 = arith.constant 60 : index
    %565 = memref.load %arg1[%c60] : memref<99xf32, #tpu.memory_space<smem>>
    %c1_259 = arith.constant 1 : index
    %c0_260 = arith.constant 0 : index
    %c20_261 = arith.constant 20 : index
    %566 = vector.load %arg4[%c1_259, %c0_260, %c20_261] : memref<2x2x358xf32, #tpu.memory_space<vmem>>, vector<1x2x256xf32>
    %567 = vector.shape_cast %566 : vector<1x2x256xf32> to vector<2x256xf32>
    %568 = vector.broadcast %565 : f32 to vector<2x256xf32>
    %569 = arith.mulf %568, %567 : vector<2x256xf32>
    %570 = arith.addf %564, %569 : vector<2x256xf32>
    %c67_262 = arith.constant 67 : index
    %571 = memref.load %arg1[%c67_262] : memref<99xf32, #tpu.memory_space<smem>>
    %c1_263 = arith.constant 1 : index
    %c0_264 = arith.constant 0 : index
    %c36_265 = arith.constant 36 : index
    %572 = vector.load %arg4[%c1_263, %c0_264, %c36_265] : memref<2x2x358xf32, #tpu.memory_space<vmem>>, vector<1x2x256xf32>
    %573 = vector.shape_cast %572 : vector<1x2x256xf32> to vector<2x256xf32>
    %574 = vector.broadcast %571 : f32 to vector<2x256xf32>
    %575 = arith.mulf %574, %573 : vector<2x256xf32>
    %576 = arith.addf %570, %575 : vector<2x256xf32>
    %c74 = arith.constant 74 : index
    %577 = memref.load %arg1[%c74] : memref<99xf32, #tpu.memory_space<smem>>
    %c1_266 = arith.constant 1 : index
    %c0_267 = arith.constant 0 : index
    %c52_268 = arith.constant 52 : index
    %578 = vector.load %arg4[%c1_266, %c0_267, %c52_268] : memref<2x2x358xf32, #tpu.memory_space<vmem>>, vector<1x2x256xf32>
    %579 = vector.shape_cast %578 : vector<1x2x256xf32> to vector<2x256xf32>
    %580 = vector.broadcast %577 : f32 to vector<2x256xf32>
    %581 = arith.mulf %580, %579 : vector<2x256xf32>
    %582 = arith.addf %576, %581 : vector<2x256xf32>
    %c81_269 = arith.constant 81 : index
    %583 = memref.load %arg1[%c81_269] : memref<99xf32, #tpu.memory_space<smem>>
    %c1_270 = arith.constant 1 : index
    %c0_271 = arith.constant 0 : index
    %c68_272 = arith.constant 68 : index
    %584 = vector.load %arg4[%c1_270, %c0_271, %c68_272] : memref<2x2x358xf32, #tpu.memory_space<vmem>>, vector<1x2x256xf32>
    %585 = vector.shape_cast %584 : vector<1x2x256xf32> to vector<2x256xf32>
    %586 = vector.broadcast %583 : f32 to vector<2x256xf32>
    %587 = arith.mulf %586, %585 : vector<2x256xf32>
    %588 = arith.addf %582, %587 : vector<2x256xf32>
    %c88 = arith.constant 88 : index
    %589 = memref.load %arg1[%c88] : memref<99xf32, #tpu.memory_space<smem>>
    %c1_273 = arith.constant 1 : index
    %c0_274 = arith.constant 0 : index
    %c84_275 = arith.constant 84 : index
    %590 = vector.load %arg4[%c1_273, %c0_274, %c84_275] : memref<2x2x358xf32, #tpu.memory_space<vmem>>, vector<1x2x256xf32>
    %591 = vector.shape_cast %590 : vector<1x2x256xf32> to vector<2x256xf32>
    %592 = vector.broadcast %589 : f32 to vector<2x256xf32>
    %593 = arith.mulf %592, %591 : vector<2x256xf32>
    %594 = arith.addf %588, %593 : vector<2x256xf32>
    %c95 = arith.constant 95 : index
    %595 = memref.load %arg1[%c95] : memref<99xf32, #tpu.memory_space<smem>>
    %c1_276 = arith.constant 1 : index
    %c0_277 = arith.constant 0 : index
    %c100_278 = arith.constant 100 : index
    %596 = vector.load %arg4[%c1_276, %c0_277, %c100_278] : memref<2x2x358xf32, #tpu.memory_space<vmem>>, vector<1x2x256xf32>
    %597 = vector.shape_cast %596 : vector<1x2x256xf32> to vector<2x256xf32>
    %598 = vector.broadcast %595 : f32 to vector<2x256xf32>
    %599 = arith.mulf %598, %597 : vector<2x256xf32>
    %600 = arith.addf %594, %599 : vector<2x256xf32>
    %601 = vector.broadcast %69 : vector<1x256xf32> to vector<2x256xf32>
    %602 = arith.mulf %600, %601 : vector<2x256xf32>
    %603 = arith.addf %517, %602 : vector<2x256xf32>
    %c54_279 = arith.constant 54 : index
    %604 = memref.load %arg1[%c54_279] : memref<99xf32, #tpu.memory_space<smem>>
    %c1_280 = arith.constant 1 : index
    %c0_281 = arith.constant 0 : index
    %c5_282 = arith.constant 5 : index
    %605 = vector.load %arg4[%c1_280, %c0_281, %c5_282] : memref<2x2x358xf32, #tpu.memory_space<vmem>>, vector<1x2x256xf32>
    %606 = vector.shape_cast %605 : vector<1x2x256xf32> to vector<2x256xf32>
    %607 = vector.broadcast %604 : f32 to vector<2x256xf32>
    %608 = arith.mulf %607, %606 : vector<2x256xf32>
    %c61 = arith.constant 61 : index
    %609 = memref.load %arg1[%c61] : memref<99xf32, #tpu.memory_space<smem>>
    %c1_283 = arith.constant 1 : index
    %c0_284 = arith.constant 0 : index
    %c21_285 = arith.constant 21 : index
    %610 = vector.load %arg4[%c1_283, %c0_284, %c21_285] : memref<2x2x358xf32, #tpu.memory_space<vmem>>, vector<1x2x256xf32>
    %611 = vector.shape_cast %610 : vector<1x2x256xf32> to vector<2x256xf32>
    %612 = vector.broadcast %609 : f32 to vector<2x256xf32>
    %613 = arith.mulf %612, %611 : vector<2x256xf32>
    %614 = arith.addf %608, %613 : vector<2x256xf32>
    %c68_286 = arith.constant 68 : index
    %615 = memref.load %arg1[%c68_286] : memref<99xf32, #tpu.memory_space<smem>>
    %c1_287 = arith.constant 1 : index
    %c0_288 = arith.constant 0 : index
    %c37_289 = arith.constant 37 : index
    %616 = vector.load %arg4[%c1_287, %c0_288, %c37_289] : memref<2x2x358xf32, #tpu.memory_space<vmem>>, vector<1x2x256xf32>
    %617 = vector.shape_cast %616 : vector<1x2x256xf32> to vector<2x256xf32>
    %618 = vector.broadcast %615 : f32 to vector<2x256xf32>
    %619 = arith.mulf %618, %617 : vector<2x256xf32>
    %620 = arith.addf %614, %619 : vector<2x256xf32>
    %c75 = arith.constant 75 : index
    %621 = memref.load %arg1[%c75] : memref<99xf32, #tpu.memory_space<smem>>
    %c1_290 = arith.constant 1 : index
    %c0_291 = arith.constant 0 : index
    %c53_292 = arith.constant 53 : index
    %622 = vector.load %arg4[%c1_290, %c0_291, %c53_292] : memref<2x2x358xf32, #tpu.memory_space<vmem>>, vector<1x2x256xf32>
    %623 = vector.shape_cast %622 : vector<1x2x256xf32> to vector<2x256xf32>
    %624 = vector.broadcast %621 : f32 to vector<2x256xf32>
    %625 = arith.mulf %624, %623 : vector<2x256xf32>
    %626 = arith.addf %620, %625 : vector<2x256xf32>
    %c82_293 = arith.constant 82 : index
    %627 = memref.load %arg1[%c82_293] : memref<99xf32, #tpu.memory_space<smem>>
    %c1_294 = arith.constant 1 : index
    %c0_295 = arith.constant 0 : index
    %c69_296 = arith.constant 69 : index
    %628 = vector.load %arg4[%c1_294, %c0_295, %c69_296] : memref<2x2x358xf32, #tpu.memory_space<vmem>>, vector<1x2x256xf32>
    %629 = vector.shape_cast %628 : vector<1x2x256xf32> to vector<2x256xf32>
    %630 = vector.broadcast %627 : f32 to vector<2x256xf32>
    %631 = arith.mulf %630, %629 : vector<2x256xf32>
    %632 = arith.addf %626, %631 : vector<2x256xf32>
    %c89 = arith.constant 89 : index
    %633 = memref.load %arg1[%c89] : memref<99xf32, #tpu.memory_space<smem>>
    %c1_297 = arith.constant 1 : index
    %c0_298 = arith.constant 0 : index
    %c85_299 = arith.constant 85 : index
    %634 = vector.load %arg4[%c1_297, %c0_298, %c85_299] : memref<2x2x358xf32, #tpu.memory_space<vmem>>, vector<1x2x256xf32>
    %635 = vector.shape_cast %634 : vector<1x2x256xf32> to vector<2x256xf32>
    %636 = vector.broadcast %633 : f32 to vector<2x256xf32>
    %637 = arith.mulf %636, %635 : vector<2x256xf32>
    %638 = arith.addf %632, %637 : vector<2x256xf32>
    %c96_300 = arith.constant 96 : index
    %639 = memref.load %arg1[%c96_300] : memref<99xf32, #tpu.memory_space<smem>>
    %c1_301 = arith.constant 1 : index
    %c0_302 = arith.constant 0 : index
    %c101_303 = arith.constant 101 : index
    %640 = vector.load %arg4[%c1_301, %c0_302, %c101_303] : memref<2x2x358xf32, #tpu.memory_space<vmem>>, vector<1x2x256xf32>
    %641 = vector.shape_cast %640 : vector<1x2x256xf32> to vector<2x256xf32>
    %642 = vector.broadcast %639 : f32 to vector<2x256xf32>
    %643 = arith.mulf %642, %641 : vector<2x256xf32>
    %644 = arith.addf %638, %643 : vector<2x256xf32>
    %645 = vector.broadcast %73 : vector<1x256xf32> to vector<2x256xf32>
    %646 = arith.mulf %644, %645 : vector<2x256xf32>
    %647 = arith.addf %559, %646 : vector<2x256xf32>
    %c55 = arith.constant 55 : index
    %648 = memref.load %arg1[%c55] : memref<99xf32, #tpu.memory_space<smem>>
    %c1_304 = arith.constant 1 : index
    %c0_305 = arith.constant 0 : index
    %c6_306 = arith.constant 6 : index
    %649 = vector.load %arg4[%c1_304, %c0_305, %c6_306] : memref<2x2x358xf32, #tpu.memory_space<vmem>>, vector<1x2x256xf32>
    %650 = vector.shape_cast %649 : vector<1x2x256xf32> to vector<2x256xf32>
    %651 = vector.broadcast %648 : f32 to vector<2x256xf32>
    %652 = arith.mulf %651, %650 : vector<2x256xf32>
    %c62 = arith.constant 62 : index
    %653 = memref.load %arg1[%c62] : memref<99xf32, #tpu.memory_space<smem>>
    %c1_307 = arith.constant 1 : index
    %c0_308 = arith.constant 0 : index
    %c22_309 = arith.constant 22 : index
    %654 = vector.load %arg4[%c1_307, %c0_308, %c22_309] : memref<2x2x358xf32, #tpu.memory_space<vmem>>, vector<1x2x256xf32>
    %655 = vector.shape_cast %654 : vector<1x2x256xf32> to vector<2x256xf32>
    %656 = vector.broadcast %653 : f32 to vector<2x256xf32>
    %657 = arith.mulf %656, %655 : vector<2x256xf32>
    %658 = arith.addf %652, %657 : vector<2x256xf32>
    %c69_310 = arith.constant 69 : index
    %659 = memref.load %arg1[%c69_310] : memref<99xf32, #tpu.memory_space<smem>>
    %c1_311 = arith.constant 1 : index
    %c0_312 = arith.constant 0 : index
    %c38_313 = arith.constant 38 : index
    %660 = vector.load %arg4[%c1_311, %c0_312, %c38_313] : memref<2x2x358xf32, #tpu.memory_space<vmem>>, vector<1x2x256xf32>
    %661 = vector.shape_cast %660 : vector<1x2x256xf32> to vector<2x256xf32>
    %662 = vector.broadcast %659 : f32 to vector<2x256xf32>
    %663 = arith.mulf %662, %661 : vector<2x256xf32>
    %664 = arith.addf %658, %663 : vector<2x256xf32>
    %c76 = arith.constant 76 : index
    %665 = memref.load %arg1[%c76] : memref<99xf32, #tpu.memory_space<smem>>
    %c1_314 = arith.constant 1 : index
    %c0_315 = arith.constant 0 : index
    %c54_316 = arith.constant 54 : index
    %666 = vector.load %arg4[%c1_314, %c0_315, %c54_316] : memref<2x2x358xf32, #tpu.memory_space<vmem>>, vector<1x2x256xf32>
    %667 = vector.shape_cast %666 : vector<1x2x256xf32> to vector<2x256xf32>
    %668 = vector.broadcast %665 : f32 to vector<2x256xf32>
    %669 = arith.mulf %668, %667 : vector<2x256xf32>
    %670 = arith.addf %664, %669 : vector<2x256xf32>
    %c83_317 = arith.constant 83 : index
    %671 = memref.load %arg1[%c83_317] : memref<99xf32, #tpu.memory_space<smem>>
    %c1_318 = arith.constant 1 : index
    %c0_319 = arith.constant 0 : index
    %c70_320 = arith.constant 70 : index
    %672 = vector.load %arg4[%c1_318, %c0_319, %c70_320] : memref<2x2x358xf32, #tpu.memory_space<vmem>>, vector<1x2x256xf32>
    %673 = vector.shape_cast %672 : vector<1x2x256xf32> to vector<2x256xf32>
    %674 = vector.broadcast %671 : f32 to vector<2x256xf32>
    %675 = arith.mulf %674, %673 : vector<2x256xf32>
    %676 = arith.addf %670, %675 : vector<2x256xf32>
    %c90 = arith.constant 90 : index
    %677 = memref.load %arg1[%c90] : memref<99xf32, #tpu.memory_space<smem>>
    %c1_321 = arith.constant 1 : index
    %c0_322 = arith.constant 0 : index
    %c86_323 = arith.constant 86 : index
    %678 = vector.load %arg4[%c1_321, %c0_322, %c86_323] : memref<2x2x358xf32, #tpu.memory_space<vmem>>, vector<1x2x256xf32>
    %679 = vector.shape_cast %678 : vector<1x2x256xf32> to vector<2x256xf32>
    %680 = vector.broadcast %677 : f32 to vector<2x256xf32>
    %681 = arith.mulf %680, %679 : vector<2x256xf32>
    %682 = arith.addf %676, %681 : vector<2x256xf32>
    %c97_324 = arith.constant 97 : index
    %683 = memref.load %arg1[%c97_324] : memref<99xf32, #tpu.memory_space<smem>>
    %c1_325 = arith.constant 1 : index
    %c0_326 = arith.constant 0 : index
    %c102_327 = arith.constant 102 : index
    %684 = vector.load %arg4[%c1_325, %c0_326, %c102_327] : memref<2x2x358xf32, #tpu.memory_space<vmem>>, vector<1x2x256xf32>
    %685 = vector.shape_cast %684 : vector<1x2x256xf32> to vector<2x256xf32>
    %686 = vector.broadcast %683 : f32 to vector<2x256xf32>
    %687 = arith.mulf %686, %685 : vector<2x256xf32>
    %688 = arith.addf %682, %687 : vector<2x256xf32>
    %689 = vector.broadcast %77 : vector<1x256xf32> to vector<2x256xf32>
    %690 = arith.mulf %688, %689 : vector<2x256xf32>
    %691 = arith.addf %603, %690 : vector<2x256xf32>
    %692 = arith.addf %691, %647 : vector<2x256xf32>
    %c98_328 = arith.constant 98 : index
    %693 = memref.load %arg1[%c98_328] : memref<99xf32, #tpu.memory_space<smem>>
    %694 = vector.broadcast %693 : f32 to vector<2x256xf32>
    %695 = arith.addf %692, %694 : vector<2x256xf32>
    %696 = arith.negf %695 : vector<2x256xf32>
    %697 = math.exp %696 : vector<2x256xf32>
    %cst_329 = arith.constant 1.000000e+00 : f32
    %698 = vector.broadcast %cst_329 : f32 to vector<2x256xf32>
    %699 = arith.addf %698, %697 : vector<2x256xf32>
    %700 = arith.divf %698, %699 : vector<2x256xf32>
    %c0_330 = arith.constant 0 : index
    %c0_331 = arith.constant 0 : index
    %c0_332 = arith.constant 0 : index
    %701 = vector.load %arg2[%c0_330, %c0_331, %c0_332] : memref<2x4x256xf32, #tpu.memory_space<vmem>>, vector<1x4x256xf32>
    %702 = vector.shape_cast %701 : vector<1x4x256xf32> to vector<4x256xf32>
    %703 = vector.extract_strided_slice %700 {offsets = [0, 0], sizes = [1, 256], strides = [1, 1]} : vector<2x256xf32> to vector<1x256xf32>
    %704 = vector.broadcast %703 : vector<1x256xf32> to vector<4x256xf32>
    %705 = arith.mulf %702, %704 : vector<4x256xf32>
    %c0_333 = arith.constant 0 : index
    %c0_334 = arith.constant 0 : index
    %c0_335 = arith.constant 0 : index
    %706 = vector.load %arg3[%c0_333, %c0_334, %c0_335] : memref<2x4x256xf32, #tpu.memory_space<vmem>>, vector<1x4x256xf32>
    %707 = vector.shape_cast %706 : vector<1x4x256xf32> to vector<4x256xf32>
    %708 = vector.shape_cast %705 : vector<4x256xf32> to vector<1x4x256xf32>
    tpu.vector_store %arg3[%c0_333, %c0_334, %c0_335], %708 {strides = array<i32>} : memref<2x4x256xf32, #tpu.memory_space<vmem>>, vector<1x4x256xf32>,
    %c1_336 = arith.constant 1 : index
    %c0_337 = arith.constant 0 : index
    %c0_338 = arith.constant 0 : index
    %709 = vector.load %arg2[%c1_336, %c0_337, %c0_338] : memref<2x4x256xf32, #tpu.memory_space<vmem>>, vector<1x4x256xf32>
    %710 = vector.shape_cast %709 : vector<1x4x256xf32> to vector<4x256xf32>
    %711 = vector.extract_strided_slice %700 {offsets = [1, 0], sizes = [1, 256], strides = [1, 1]} : vector<2x256xf32> to vector<1x256xf32>
    %712 = vector.broadcast %711 : vector<1x256xf32> to vector<4x256xf32>
    %713 = arith.mulf %710, %712 : vector<4x256xf32>
    %c1_339 = arith.constant 1 : index
    %c0_340 = arith.constant 0 : index
    %c0_341 = arith.constant 0 : index
    %714 = vector.load %arg3[%c1_339, %c0_340, %c0_341] : memref<2x4x256xf32, #tpu.memory_space<vmem>>, vector<1x4x256xf32>
    %715 = vector.shape_cast %714 : vector<1x4x256xf32> to vector<4x256xf32>
    %716 = vector.shape_cast %713 : vector<4x256xf32> to vector<1x4x256xf32>
    tpu.vector_store %arg3[%c1_339, %c0_340, %c0_341], %716 {strides = array<i32>} : memref<2x4x256xf32, #tpu.memory_space<vmem>>, vector<1x4x256xf32>,
    return
  }
  func.func @transform_0(%arg0: i32) -> i32 {
    %c0_i32 = arith.constant 0 : i32
    %c0_i32_0 = arith.constant 0 : i32
    return %c0_i32 : i32
  }
  func.func @transform_1(%arg0: i32) -> (i32, i32, i32) {
    %c0_i32 = arith.constant 0 : i32
    %c0_i32_0 = arith.constant 0 : i32
    %c0_i32_1 = arith.constant 0 : i32
    return %arg0, %c0_i32, %c0_i32_0 : i32, i32, i32
  }
  func.func @transform_2(%arg0: i32) -> (i32, i32, i32) {
    %c0_i32 = arith.constant 0 : i32
    %c0_i32_0 = arith.constant 0 : i32
    %c0_i32_1 = arith.constant 0 : i32
    return %arg0, %c0_i32, %c0_i32_0 : i32, i32, i32
  }
}

</mosaic_0001>

<llo_original>
// kernel: tpu_custom_call.1
$region0: #{tpu_custom_call.1}
  #allocation0 [shape = 'u32[]', space=smem, size = 0x4, offset = 0x4, fixed_abs, tag = 'smem constant byte address 0x4 - core index']
  #allocation1 [shape = 'u32[144,128]{1,0:T(1,128)}', space=vmem, size = 0x12000, scoped, tag = 'internal scratch']
  #allocation2 [shape = 'f32[2,2,358]{2,1,0:T(2,128)}', space=vmem, size = 0x1800, scoped, tag = 'scratch operand']
  %s0 = inlined_call_operand.hbm [shape: f32[99], index: 0, kind: input, shape index: {}]
  %s1 = inlined_call_operand.hbm [shape: f32[2,4,256], index: 1, kind: input, shape index: {}]
  %s2 = inlined_call_operand.hbm [shape: f32[2,4,256], index: 2, kind: output, shape index: {}]
  %s3 = sld [smem:[#allocation0]]
  $region26: #{tpu_custom_call.1} parent=0
    _
  %s5 = ssub.s32 1, %s3
  %s6 = scalar_select 0, %s5, %s3
  $region1: #{tpu_custom_call.1} parent=0
    #allocation3 [shape = 'u8[512]{0}', space=smem, size = 0x200, scoped, tag = 'input window, operand 0, single buffered']
    #allocation4 [shape = 's32[1]{0}', space=sflag, size = 0x4, scoped, tag = 'scoped memory for tpu_custom_call.1']
    #allocation5 [shape = 's32[1]{0}', space=sflag, size = 0x4, scoped, tag = 'scoped memory for tpu_custom_call.1']
    #allocation6 [shape = 's32[1]{0}', space=sflag, size = 0x4, scoped, tag = 'scoped memory for tpu_custom_call.1']
    #allocation7 [shape = 'u8[8192]{0}', space=vmem, size = 0x2000, scoped, tag = 'input window, operand 1, single buffered']
    #allocation8 [shape = 'u8[8192]{0}', space=vmem, size = 0x2000, scoped, tag = 'output window, operand 0, single buffered']
    %7 = vsyncpa [#allocation6], 0
    %8 = vsyncpa [#allocation4], 0
    %9 = vsyncpa [#allocation5], 0
    // Predicated region
    $region2: #{tpu_custom_call.1} parent=1 // pred_check
      _
    $region3: #{tpu_custom_call.1} parent=1 // pred_check_branch
      %11 = sbr.rel (0) target = $region5
    $region4: #{tpu_custom_call.1} parent=1 // pred_region
      %s13 = ssub.s32 16, 16
      %14 = vsyncadd [#allocation6], %s13
      %17 = dma.hbm_to_smem %s0, 16, [#allocation3], [#allocation6]
    $region5: #{tpu_custom_call.1} parent=1 // pred_fallthru
      _
    // Predicated region
    $region6: #{tpu_custom_call.1} parent=1 // pred_check
      _
    $region7: #{tpu_custom_call.1} parent=1 // pred_check_branch
      %19 = sbr.rel (0) target = $region9
    $region8: #{tpu_custom_call.1} parent=1 // pred_region
      %s21 = ssub.s32 256, 256
      %22 = vsyncadd [#allocation4], %s21
      %s23 = sshll.u32 [#allocation7], 4
      %s24 = int_to_ptr.vmem [resolvable:$true] %s23
      %29 = dma.hbm_to_vmem [thread:$0]  %s1, 256, %s24, [#allocation4], 128, 128, 8
    $region9: #{tpu_custom_call.1} parent=1 // pred_fallthru
      _
    // Predicated region
    $region10: #{tpu_custom_call.1} parent=1 // pred_check
      _
    $region11: #{tpu_custom_call.1} parent=1 // pred_check_branch
      %31 = sbr.rel (0) target = $region13
    $region12: #{tpu_custom_call.1} parent=1 // pred_region
      %32 = dma.done [#allocation6], 16
    $region13: #{tpu_custom_call.1} parent=1 // pred_fallthru
      _
    // Predicated region
    $region14: #{tpu_custom_call.1} parent=1 // pred_check
      _
    $region15: #{tpu_custom_call.1} parent=1 // pred_check_branch
      %34 = sbr.rel (0) target = $region17
    $region16: #{tpu_custom_call.1} parent=1 // pred_region
      %35 = dma.done [#allocation4], 256
    $region17: #{tpu_custom_call.1} parent=1 // pred_fallthru
      _
    %36 = sfence
    %vm37 = vcmask 410624
    %38 = vst.msk [vmem:[#allocation2] sm:$0x3] %vm37, 0.0
    %vm39 = vcmask 828824
    %40 = vst.msk [vmem:[#allocation2 + $0x4] sm:$0x3] %vm39, 0.0
    %s41 = scalar_lea.vmem [#allocation2], 6
    %42 = vst.msk [vmem:[%s41] sm:$0x3] %vm37, 0.0
    %43 = vst.msk [vmem:[%s41 + $0x4] sm:$0x3] %vm39, 0.0
    %v44 = vld [vmem:[#allocation7] sm:$0xff]
    %v46 = vcombine.high %v44, %v44
    %vm48 = vcmask 1043456
    %v49 = vsel %vm48, %v44, -inf
    %v50 = vrot.slane %v49, 4
    %v51 = vmax.f32 %v49, %v50
    %v52 = vrot.slane %v51, 2
    %v53 = vmax.f32 %v51, %v52
    %v54 = vrot.slane %v53, 1
    %v55 = vmax.f32 %v53, %v54
    %v56 = vsel %vm48, %v46, -inf
    %v57 = vrot.slane %v56, 4
    %v58 = vmax.f32 %v56, %v57
    %v59 = vrot.slane %v58, 2
    %v60 = vmax.f32 %v58, %v59
    %v61 = vrot.slane %v60, 1
    %v62 = vmax.f32 %v60, %v61
    %v63 = vsel %vm48, %v44, 0.0
    %v64 = vrot.slane %v63, 4
    %v65 = vadd.f32 %v63, %v64
    %v66 = vrot.slane %v65, 2
    %v67 = vadd.f32 %v65, %v66
    %v68 = vrot.slane %v67, 1
    %v69 = vadd.f32 %v67, %v68
    %v70 = vsel %vm48, %v46, 0.0
    %v71 = vrot.slane %v70, 4
    %v72 = vadd.f32 %v70, %v71
    %v73 = vrot.slane %v72, 2
    %v74 = vadd.f32 %v72, %v73
    %v75 = vrot.slane %v74, 1
    %v76 = vadd.f32 %v74, %v75
    %v79 = vcombine.low %v55, %v62
    %v81 = vunpack.c.l.s4 1966171168
    %v82 = vunpack.c.0.s8 %v81
    %v83 = vlaneseq
    %v84 = vshrl.u32 %v83, 7
    %v85 = vsub.s32 %v82, %v84
    %v86 = vrot.slane %v79, %v85
    %v88 = vunpack.c.l.s4 1966171168
    %v89 = vunpack.c.0.s8 %v88
    %v90 = vlaneseq
    %v91 = vshrl.u32 %v90, 7
    %v92 = vsub.s32 %v89, %v91
    %v93 = vrot.slane %v86, %v92
    %94 = vrot.lane.b32.xlu0 %v93, 51
    %v95 = vpop.permute.xlu0 %94
    %v96 = vrot.slane %v95, 7
    %vm97 = vcmask 416768
    %v98 = vsel %vm97, %v96, %v95
    %v100 = vlaneseq
    %vm101 = vcmp.ge.s32.totalorder %v100, 51
    %vm102 = vcmp.lt.s32.totalorder %v100, 307
    %vm103 = vmand %vm101, %vm102
    %104 = vst.msk [vmem:[#allocation2] ss:$2 sm:$0x7] %vm103, %v98
    %v107 = vcombine.low %v69, %v76
    %v109 = vunpack.c.l.s4 1966171168
    %v110 = vunpack.c.0.s8 %v109
    %v111 = vlaneseq
    %v112 = vshrl.u32 %v111, 7
    %v113 = vsub.s32 %v110, %v112
    %v114 = vrot.slane %v107, %v113
    %v116 = vunpack.c.l.s4 1966171168
    %v117 = vunpack.c.0.s8 %v116
    %v118 = vlaneseq
    %v119 = vshrl.u32 %v118, 7
    %v120 = vsub.s32 %v117, %v119
    %v121 = vrot.slane %v114, %v120
    %122 = vrot.lane.b32.xlu0 %v121, 51
    %v123 = vpop.permute.xlu0 %122
    %v124 = vrot.slane %v123, 7
    %v125 = vsel %vm97, %v124, %v123
    %127 = vst.msk [vmem:[%s41] ss:$2 sm:$0x7] %vm103, %v125
    %s128 = scalar_lea.vmem [#allocation7], 8
    %v129 = vld [vmem:[%s128] sm:$0xff]
    %v131 = vcombine.high %v129, %v129
    %v133 = vsel %vm48, %v129, -inf
    %v134 = vrot.slane %v133, 4
    %v135 = vmax.f32 %v133, %v134
    %v136 = vrot.slane %v135, 2
    %v137 = vmax.f32 %v135, %v136
    %v138 = vrot.slane %v137, 1
    %v139 = vmax.f32 %v137, %v138
    %v140 = vsel %vm48, %v131, -inf
    %v141 = vrot.slane %v140, 4
    %v142 = vmax.f32 %v140, %v141
    %v143 = vrot.slane %v142, 2
    %v144 = vmax.f32 %v142, %v143
    %v145 = vrot.slane %v144, 1
    %v146 = vmax.f32 %v144, %v145
    %v147 = vsel %vm48, %v129, 0.0
    %v148 = vrot.slane %v147, 4
    %v149 = vadd.f32 %v147, %v148
    %v150 = vrot.slane %v149, 2
    %v151 = vadd.f32 %v149, %v150
    %v152 = vrot.slane %v151, 1
    %v153 = vadd.f32 %v151, %v152
    %v154 = vsel %vm48, %v131, 0.0
    %v155 = vrot.slane %v154, 4
    %v156 = vadd.f32 %v154, %v155
    %v157 = vrot.slane %v156, 2
    %v158 = vadd.f32 %v156, %v157
    %v159 = vrot.slane %v158, 1
    %v160 = vadd.f32 %v158, %v159
    %v163 = vcombine.low %v139, %v146
    %v165 = vunpack.c.l.s4 1966171168
    %v166 = vunpack.c.0.s8 %v165
    %v167 = vlaneseq
    %v168 = vshrl.u32 %v167, 7
    %v169 = vsub.s32 %v166, %v168
    %v170 = vrot.slane %v163, %v169
    %v172 = vunpack.c.l.s4 1966171168
    %v173 = vunpack.c.0.s8 %v172
    %v174 = vlaneseq
    %v175 = vshrl.u32 %v174, 7
    %v176 = vsub.s32 %v173, %v175
    %v177 = vrot.slane %v170, %v176
    %178 = vrot.lane.b32.xlu0 %v177, 51
    %v179 = vpop.permute.xlu0 %178
    %v180 = vrot.slane %v179, 7
    %v181 = vsel %vm97, %v180, %v179
    %s183 = scalar_lea.vmem [#allocation2], 1
    %184 = vst.msk [vmem:[%s183] ss:$2 sm:$0x7] %vm103, %v181
    %v187 = vcombine.low %v153, %v160
    %v189 = vunpack.c.l.s4 1966171168
    %v190 = vunpack.c.0.s8 %v189
    %v191 = vlaneseq
    %v192 = vshrl.u32 %v191, 7
    %v193 = vsub.s32 %v190, %v192
    %v194 = vrot.slane %v187, %v193
    %v196 = vunpack.c.l.s4 1966171168
    %v197 = vunpack.c.0.s8 %v196
    %v198 = vlaneseq
    %v199 = vshrl.u32 %v198, 7
    %v200 = vsub.s32 %v197, %v199
    %v201 = vrot.slane %v194, %v200
    %202 = vrot.lane.b32.xlu0 %v201, 51
    %v203 = vpop.permute.xlu0 %202
    %v204 = vrot.slane %v203, 7
    %v205 = vsel %vm97, %v204, %v203
    %s207 = scalar_lea.vmem %s41, 1 [#allocation2]
    %208 = vst.msk [vmem:[%s207] ss:$2 sm:$0x7] %vm103, %v205
    %v209 = vlaneseq
    %v210 = vand.u32 %v209, 127
    %v211 = vadd.s32 %v210, 128
    %vm212 = vcmp.lt.s32.totalorder %v210, 0
    %v213 = vsub.s32 0, %v210
    %v214 = vsel %vm212, %v213, %v210
    %v215 = vshrl.u32 %v214, 4
    %v216 = vand.u32 %v214, 15
    %v217 = vsub.s32 0, %v216
    %v218 = vsel %vm212, %v217, %v216
    %vm219 = vcmp.lt.s32.totalorder %v211, 0
    %v220 = vsub.s32 0, %v211
    %v221 = vsel %vm219, %v220, %v211
    %v222 = vshrl.u32 %v221, 4
    %v223 = vand.u32 %v221, 15
    %v224 = vsub.s32 0, %v223
    %v225 = vsel %vm219, %v224, %v223
    %vm226 = vcmp.ne.s32.totalorder %v218, 0
    %vm227 = vcmp.ne.s32.totalorder %v225, 0
    %vm228 = vcmp.lt.s32.totalorder %v218, 0
    %vm229 = vcmp.lt.s32.totalorder %v225, 0
    %vm230 = vmand %vm228, %vm226
    %vm231 = vmand %vm229, %vm227
    %v232 = vadd.s32 %v218, 16
    %v233 = vadd.s32 %v225, 16
    %v234 = vsel %vm230, %v232, %v218
    %v235 = vsel %vm231, %v233, %v225
    %vm236 = vcmp.ge.s32.totalorder %v234, 3
    %vm237 = vcmp.ge.s32.totalorder %v235, 3
    %v238 = vsel %vm236, 1, 0
    %v239 = vsel %vm237, 1, 0
    %v240 = vcvt.s32.f32 %v238
    %v241 = vcvt.s32.f32 %v239
    %vm242 = vcmp.ge.s32.totalorder %v234, 2
    %vm243 = vcmp.ge.s32.totalorder %v235, 2
    %v244 = vsel %vm242, 1, 0
    %v245 = vsel %vm243, 1, 0
    %v246 = vcvt.s32.f32 %v244
    %v247 = vcvt.s32.f32 %v245
    %vm248 = vcmp.ge.s32.totalorder %v234, 1
    %vm249 = vcmp.ge.s32.totalorder %v235, 1
    %v250 = vsel %vm248, 1, 0
    %v251 = vsel %vm249, 1, 0
    %v252 = vcvt.s32.f32 %v250
    %v253 = vcvt.s32.f32 %v251
    %vm254 = vcmp.lt.s32.totalorder %v234, 15
    %vm255 = vcmp.lt.s32.totalorder %v235, 15
    %v256 = vsel %vm254, 1, 0
    %v257 = vsel %vm255, 1, 0
    %v258 = vcvt.s32.f32 %v256
    %v259 = vcvt.s32.f32 %v257
    %vm260 = vcmp.lt.s32.totalorder %v234, 14
    %vm261 = vcmp.lt.s32.totalorder %v235, 14
    %v262 = vsel %vm260, 1, 0
    %v263 = vsel %vm261, 1, 0
    %v264 = vcvt.s32.f32 %v262
    %v265 = vcvt.s32.f32 %v263
    %vm266 = vcmp.lt.s32.totalorder %v234, 13
    %vm267 = vcmp.lt.s32.totalorder %v235, 13
    %v268 = vsel %vm266, 1, 0
    %v269 = vsel %vm267, 1, 0
    %v270 = vcvt.s32.f32 %v268
    %v271 = vcvt.s32.f32 %v269
    %s272 = sld [smem:[#allocation3]]
    %v273 = vld [vmem:[#allocation2] sm:$0xf]
    %v274 = vstv %s272
    %v275 = vmul.f32 %v274, %v273
    %s276 = sld [smem:[#allocation3 + $0x7]]
    %v277 = vld [vmem:[#allocation2] sm:$0x3f]
    %v278 = vstv %s276
    %v279 = vmul.f32 %v278, %v277
    %281 = vrot.lane.b32.xlu0 %v279, 112
    %v282 = vpop.permute.xlu0 %281
    %v283 = vrot.slane %v282, 2
    %vm284 = vcmask 916480
    %v285 = vsel %vm284, %v282, %v283
    %v287 = vadd.f32 %v275, %v285
    %s288 = sld [smem:[#allocation3 + $0xe]]
    %v289 = vstv %s288
    %v290 = vmul.f32 %v289, %v277
    %292 = vrot.lane.b32.xlu0 %v290, 96
    %v293 = vpop.permute.xlu0 %292
    %v294 = vrot.slane %v293, 2
    %vm295 = vcmask 785408
    %v296 = vsel %vm295, %v293, %v294
    %v298 = vadd.f32 %v287, %v296
    %s299 = sld [smem:[#allocation3 + $0x15]]
    %v300 = vstv %s299
    %v301 = vmul.f32 %v300, %v277
    %303 = vrot.lane.b32.xlu0 %v301, 80
    %v304 = vpop.permute.xlu0 %303
    %v305 = vrot.slane %v304, 2
    %vm306 = vcmask 654336
    %v307 = vsel %vm306, %v304, %v305
    %v309 = vadd.f32 %v298, %v307
    %s310 = sld [smem:[#allocation3 + $0x1c]]
    %v311 = vstv %s310
    %v312 = vmul.f32 %v311, %v277
    %314 = vrot.lane.b32.xlu0 %v312, 64
    %v315 = vpop.permute.xlu0 %314
    %v316 = vrot.slane %v315, 2
    %vm317 = vcmask 523264
    %v318 = vsel %vm317, %v315, %v316
    %v320 = vadd.f32 %v309, %v318
    %s321 = sld [smem:[#allocation3 + $0x23]]
    %v322 = vstv %s321
    %v323 = vmul.f32 %v322, %v277
    %325 = vrot.lane.b32.xlu0 %v323, 48
    %v326 = vpop.permute.xlu0 %325
    %v327 = vrot.slane %v326, 2
    %vm328 = vcmask 392192
    %v329 = vsel %vm328, %v326, %v327
    %v331 = vadd.f32 %v320, %v329
    %s332 = sld [smem:[#allocation3 + $0x2a]]
    %v333 = vstv %s332
    %v334 = vmul.f32 %v333, %v277
    %336 = vrot.lane.b32.xlu0 %v334, 32
    %v337 = vpop.permute.xlu0 %336
    %v338 = vrot.slane %v337, 2
    %vm339 = vcmask 261120
    %v340 = vsel %vm339, %v337, %v338
    %v342 = vadd.f32 %v331, %v340
    %v345 = vcombine.low %v240, %v241
    %v347 = vunpack.c.l.s4 1983009808
    %v348 = vunpack.c.0.s8 %v347
    %v349 = vlaneseq
    %v350 = vshrl.u32 %v349, 7
    %v351 = vsub.s32 %v348, %v350
    %v352 = vrot.slane %v345, %v351
    %v354 = vmul.f32 %v342, %v352
    %v355 = vadd.f32 %v354, 0.0
    %s356 = sld [smem:[#allocation3 + $0x1]]
    %v357 = vld [vmem:[#allocation2] sm:$0x3f]
    %v358 = vstv %s356
    %v359 = vmul.f32 %v358, %v357
    %s360 = sld [smem:[#allocation3 + $0x8]]
    %v361 = vstv %s360
    %v362 = vmul.f32 %v361, %v357
    %364 = vrot.lane.b32.xlu0 %v362, 112
    %v365 = vpop.permute.xlu0 %364
    %v366 = vrot.slane %v365, 2
    %v367 = vsel %vm284, %v365, %v366
    %v369 = vadd.f32 %v359, %v367
    %s370 = sld [smem:[#allocation3 + $0xf]]
    %v371 = vstv %s370
    %v372 = vmul.f32 %v371, %v357
    %374 = vrot.lane.b32.xlu0 %v372, 96
    %v375 = vpop.permute.xlu0 %374
    %v376 = vrot.slane %v375, 2
    %v377 = vsel %vm295, %v375, %v376
    %v379 = vadd.f32 %v369, %v377
    %s380 = sld [smem:[#allocation3 + $0x16]]
    %v381 = vstv %s380
    %v382 = vmul.f32 %v381, %v357
    %384 = vrot.lane.b32.xlu0 %v382, 80
    %v385 = vpop.permute.xlu0 %384
    %v386 = vrot.slane %v385, 2
    %v387 = vsel %vm306, %v385, %v386
    %v389 = vadd.f32 %v379, %v387
    %s390 = sld [smem:[#allocation3 + $0x1d]]
    %v391 = vstv %s390
    %v392 = vmul.f32 %v391, %v357
    %394 = vrot.lane.b32.xlu0 %v392, 64
    %v395 = vpop.permute.xlu0 %394
    %v396 = vrot.slane %v395, 2
    %v397 = vsel %vm317, %v395, %v396
    %v399 = vadd.f32 %v389, %v397
    %s400 = sld [smem:[#allocation3 + $0x24]]
    %v401 = vstv %s400
    %v402 = vmul.f32 %v401, %v357
    %404 = vrot.lane.b32.xlu0 %v402, 48
    %v405 = vpop.permute.xlu0 %404
    %v406 = vrot.slane %v405, 2
    %v407 = vsel %vm328, %v405, %v406
    %v409 = vadd.f32 %v399, %v407
    %s410 = sld [smem:[#allocation3 + $0x2b]]
    %v411 = vstv %s410
    %v412 = vmul.f32 %v411, %v357
    %414 = vrot.lane.b32.xlu0 %v412, 32
    %v415 = vpop.permute.xlu0 %414
    %v416 = vrot.slane %v415, 2
    %v417 = vsel %vm339, %v415, %v416
    %v419 = vadd.f32 %v409, %v417
    %v422 = vcombine.low %v246, %v247
    %v424 = vunpack.c.l.s4 1983009808
    %v425 = vunpack.c.0.s8 %v424
    %v426 = vlaneseq
    %v427 = vshrl.u32 %v426, 7
    %v428 = vsub.s32 %v425, %v427
    %v429 = vrot.slane %v422, %v428
    %430 = vrot.lane.b32.xlu0 %v429, 1
    %v431 = vpop.permute.xlu0 %430
    %v432 = vrot.slane %v431, 6
    %vm433 = vcmask 7168
    %v434 = vsel %vm433, %v432, %v431
    %v436 = vmul.f32 %v419, %v434
    %v437 = vadd.f32 %v436, 0.0
    %s438 = sld [smem:[#allocation3 + $0x2]]
    %v439 = vld [vmem:[#allocation2] sm:$0x3f]
    %v440 = vstv %s438
    %v441 = vmul.f32 %v440, %v439
    %s442 = sld [smem:[#allocation3 + $0x9]]
    %v443 = vstv %s442
    %v444 = vmul.f32 %v443, %v439
    %446 = vrot.lane.b32.xlu0 %v444, 112
    %v447 = vpop.permute.xlu0 %446
    %v448 = vrot.slane %v447, 2
    %v449 = vsel %vm284, %v447, %v448
    %v451 = vadd.f32 %v441, %v449
    %s452 = sld [smem:[#allocation3 + $0x10]]
    %v453 = vstv %s452
    %v454 = vmul.f32 %v453, %v439
    %456 = vrot.lane.b32.xlu0 %v454, 96
    %v457 = vpop.permute.xlu0 %456
    %v458 = vrot.slane %v457, 2
    %v459 = vsel %vm295, %v457, %v458
    %v461 = vadd.f32 %v451, %v459
    %s462 = sld [smem:[#allocation3 + $0x17]]
    %v463 = vstv %s462
    %v464 = vmul.f32 %v463, %v439
    %466 = vrot.lane.b32.xlu0 %v464, 80
    %v467 = vpop.permute.xlu0 %466
    %v468 = vrot.slane %v467, 2
    %v469 = vsel %vm306, %v467, %v468
    %v471 = vadd.f32 %v461, %v469
    %s472 = sld [smem:[#allocation3 + $0x1e]]
    %v473 = vstv %s472
    %v474 = vmul.f32 %v473, %v439
    %476 = vrot.lane.b32.xlu0 %v474, 64
    %v477 = vpop.permute.xlu0 %476
    %v478 = vrot.slane %v477, 2
    %v479 = vsel %vm317, %v477, %v478
    %v481 = vadd.f32 %v471, %v479
    %s482 = sld [smem:[#allocation3 + $0x25]]
    %v483 = vstv %s482
    %v484 = vmul.f32 %v483, %v439
    %486 = vrot.lane.b32.xlu0 %v484, 48
    %v487 = vpop.permute.xlu0 %486
    %v488 = vrot.slane %v487, 2
    %v489 = vsel %vm328, %v487, %v488
    %v491 = vadd.f32 %v481, %v489
    %s492 = sld [smem:[#allocation3 + $0x2c]]
    %v493 = vstv %s492
    %v494 = vmul.f32 %v493, %v439
    %496 = vrot.lane.b32.xlu0 %v494, 32
    %v497 = vpop.permute.xlu0 %496
    %v498 = vrot.slane %v497, 2
    %v499 = vsel %vm339, %v497, %v498
    %v501 = vadd.f32 %v491, %v499
    %v504 = vcombine.low %v252, %v253
    %v506 = vunpack.c.l.s4 1983009808
    %v507 = vunpack.c.0.s8 %v506
    %v508 = vlaneseq
    %v509 = vshrl.u32 %v508, 7
    %v510 = vsub.s32 %v507, %v509
    %v511 = vrot.slane %v504, %v510
    %512 = vrot.lane.b32.xlu0 %v511, 2
    %v513 = vpop.permute.xlu0 %512
    %v514 = vrot.slane %v513, 6
    %vm515 = vcmask 15360
    %v516 = vsel %vm515, %v514, %v513
    %v518 = vmul.f32 %v501, %v516
    %520 = vrot.lane.b32.xlu0 %v518, 126
    %v521 = vpop.permute.xlu0 %520
    %v522 = vrot.slane %v521, 2
    %vm523 = vcmask 1031168
    %v524 = vsel %vm523, %v521, %v522
    %v526 = vadd.f32 %v355, %v524
    %s527 = sld [smem:[#allocation3 + $0x3]]
    %v528 = vld [vmem:[#allocation2] sm:$0x3f]
    %v529 = vstv %s527
    %v530 = vmul.f32 %v529, %v528
    %s531 = sld [smem:[#allocation3 + $0xa]]
    %v532 = vstv %s531
    %v533 = vmul.f32 %v532, %v528
    %535 = vrot.lane.b32.xlu0 %v533, 112
    %v536 = vpop.permute.xlu0 %535
    %v537 = vrot.slane %v536, 2
    %v538 = vsel %vm284, %v536, %v537
    %v540 = vadd.f32 %v530, %v538
    %s541 = sld [smem:[#allocation3 + $0x11]]
    %v542 = vstv %s541
    %v543 = vmul.f32 %v542, %v528
    %545 = vrot.lane.b32.xlu0 %v543, 96
    %v546 = vpop.permute.xlu0 %545
    %v547 = vrot.slane %v546, 2
    %v548 = vsel %vm295, %v546, %v547
    %v550 = vadd.f32 %v540, %v548
    %s551 = sld [smem:[#allocation3 + $0x18]]
    %v552 = vstv %s551
    %v553 = vmul.f32 %v552, %v528
    %555 = vrot.lane.b32.xlu0 %v553, 80
    %v556 = vpop.permute.xlu0 %555
    %v557 = vrot.slane %v556, 2
    %v558 = vsel %vm306, %v556, %v557
    %v560 = vadd.f32 %v550, %v558
    %s561 = sld [smem:[#allocation3 + $0x1f]]
    %v562 = vstv %s561
    %v563 = vmul.f32 %v562, %v528
    %565 = vrot.lane.b32.xlu0 %v563, 64
    %v566 = vpop.permute.xlu0 %565
    %v567 = vrot.slane %v566, 2
    %v568 = vsel %vm317, %v566, %v567
    %v570 = vadd.f32 %v560, %v568
    %s571 = sld [smem:[#allocation3 + $0x26]]
    %v572 = vstv %s571
    %v573 = vmul.f32 %v572, %v528
    %575 = vrot.lane.b32.xlu0 %v573, 48
    %v576 = vpop.permute.xlu0 %575
    %v577 = vrot.slane %v576, 2
    %v578 = vsel %vm328, %v576, %v577
    %v580 = vadd.f32 %v570, %v578
    %s581 = sld [smem:[#allocation3 + $0x2d]]
    %v582 = vstv %s581
    %v583 = vmul.f32 %v582, %v528
    %585 = vrot.lane.b32.xlu0 %v583, 32
    %v586 = vpop.permute.xlu0 %585
    %v587 = vrot.slane %v586, 2
    %v588 = vsel %vm339, %v586, %v587
    %v590 = vadd.f32 %v580, %v588
    %592 = vrot.lane.b32.xlu0 %v590, 126
    %v593 = vpop.permute.xlu0 %592
    %v594 = vrot.slane %v593, 2
    %v595 = vsel %vm523, %v593, %v594
    %v597 = vadd.f32 %v437, %v595
    %s598 = sld [smem:[#allocation3 + $0x4]]
    %v599 = vstv %s598
    %v600 = vmul.f32 %v599, %v528
    %s601 = sld [smem:[#allocation3 + $0xb]]
    %v602 = vstv %s601
    %v603 = vmul.f32 %v602, %v528
    %605 = vrot.lane.b32.xlu0 %v603, 112
    %v606 = vpop.permute.xlu0 %605
    %v607 = vrot.slane %v606, 2
    %v608 = vsel %vm284, %v606, %v607
    %v610 = vadd.f32 %v600, %v608
    %s611 = sld [smem:[#allocation3 + $0x12]]
    %v612 = vstv %s611
    %v613 = vmul.f32 %v612, %v528
    %615 = vrot.lane.b32.xlu0 %v613, 96
    %v616 = vpop.permute.xlu0 %615
    %v617 = vrot.slane %v616, 2
    %v618 = vsel %vm295, %v616, %v617
    %v620 = vadd.f32 %v610, %v618
    %s621 = sld [smem:[#allocation3 + $0x19]]
    %v622 = vstv %s621
    %v623 = vmul.f32 %v622, %v528
    %625 = vrot.lane.b32.xlu0 %v623, 80
    %v626 = vpop.permute.xlu0 %625
    %v627 = vrot.slane %v626, 2
    %v628 = vsel %vm306, %v626, %v627
    %v630 = vadd.f32 %v620, %v628
    %s631 = sld [smem:[#allocation3 + $0x20]]
    %v632 = vstv %s631
    %v633 = vmul.f32 %v632, %v528
    %635 = vrot.lane.b32.xlu0 %v633, 64
    %v636 = vpop.permute.xlu0 %635
    %v637 = vrot.slane %v636, 2
    %v638 = vsel %vm317, %v636, %v637
    %v640 = vadd.f32 %v630, %v638
    %s641 = sld [smem:[#allocation3 + $0x27]]
    %v642 = vstv %s641
    %v643 = vmul.f32 %v642, %v528
    %645 = vrot.lane.b32.xlu0 %v643, 48
    %v646 = vpop.permute.xlu0 %645
    %v647 = vrot.slane %v646, 2
    %v648 = vsel %vm328, %v646, %v647
    %v650 = vadd.f32 %v640, %v648
    %s651 = sld [smem:[#allocation3 + $0x2e]]
    %v652 = vstv %s651
    %v653 = vmul.f32 %v652, %v528
    %655 = vrot.lane.b32.xlu0 %v653, 32
    %v656 = vpop.permute.xlu0 %655
    %v657 = vrot.slane %v656, 2
    %v658 = vsel %vm339, %v656, %v657
    %v660 = vadd.f32 %v650, %v658
    %v663 = vcombine.low %v258, %v259
    %v665 = vunpack.c.l.s4 1983009808
    %v666 = vunpack.c.0.s8 %v665
    %v667 = vlaneseq
    %v668 = vshrl.u32 %v667, 7
    %v669 = vsub.s32 %v666, %v668
    %v670 = vrot.slane %v663, %v669
    %671 = vrot.lane.b32.xlu0 %v670, 4
    %v672 = vpop.permute.xlu0 %671
    %v673 = vrot.slane %v672, 6
    %vm674 = vcmask 31744
    %v675 = vsel %vm674, %v673, %v672
    %v677 = vmul.f32 %v660, %v675
    %679 = vrot.lane.b32.xlu0 %v677, 124
    %v680 = vpop.permute.xlu0 %679
    %v681 = vrot.slane %v680, 2
    %vm682 = vcmask 1014784
    %v683 = vsel %vm682, %v680, %v681
    %v685 = vadd.f32 %v526, %v683
    %s686 = sld [smem:[#allocation3 + $0x5]]
    %v687 = vld [vmem:[#allocation2] sm:$0x3f]
    %v688 = vstv %s686
    %v689 = vmul.f32 %v688, %v687
    %s690 = sld [smem:[#allocation3 + $0xc]]
    %v691 = vstv %s690
    %v692 = vmul.f32 %v691, %v687
    %694 = vrot.lane.b32.xlu0 %v692, 112
    %v695 = vpop.permute.xlu0 %694
    %v696 = vrot.slane %v695, 2
    %v697 = vsel %vm284, %v695, %v696
    %v699 = vadd.f32 %v689, %v697
    %s700 = sld [smem:[#allocation3 + $0x13]]
    %v701 = vstv %s700
    %v702 = vmul.f32 %v701, %v687
    %704 = vrot.lane.b32.xlu0 %v702, 96
    %v705 = vpop.permute.xlu0 %704
    %v706 = vrot.slane %v705, 2
    %v707 = vsel %vm295, %v705, %v706
    %v709 = vadd.f32 %v699, %v707
    %s710 = sld [smem:[#allocation3 + $0x1a]]
    %v711 = vstv %s710
    %v712 = vmul.f32 %v711, %v687
    %714 = vrot.lane.b32.xlu0 %v712, 80
    %v715 = vpop.permute.xlu0 %714
    %v716 = vrot.slane %v715, 2
    %v717 = vsel %vm306, %v715, %v716
    %v719 = vadd.f32 %v709, %v717
    %s720 = sld [smem:[#allocation3 + $0x21]]
    %v721 = vstv %s720
    %v722 = vmul.f32 %v721, %v687
    %724 = vrot.lane.b32.xlu0 %v722, 64
    %v725 = vpop.permute.xlu0 %724
    %v726 = vrot.slane %v725, 2
    %v727 = vsel %vm317, %v725, %v726
    %v729 = vadd.f32 %v719, %v727
    %s730 = sld [smem:[#allocation3 + $0x28]]
    %v731 = vstv %s730
    %v732 = vmul.f32 %v731, %v687
    %734 = vrot.lane.b32.xlu0 %v732, 48
    %v735 = vpop.permute.xlu0 %734
    %v736 = vrot.slane %v735, 2
    %v737 = vsel %vm328, %v735, %v736
    %v739 = vadd.f32 %v729, %v737
    %s740 = sld [smem:[#allocation3 + $0x2f]]
    %v741 = vstv %s740
    %v742 = vmul.f32 %v741, %v687
    %744 = vrot.lane.b32.xlu0 %v742, 32
    %v745 = vpop.permute.xlu0 %744
    %v746 = vrot.slane %v745, 2
    %v747 = vsel %vm339, %v745, %v746
    %v749 = vadd.f32 %v739, %v747
    %v752 = vcombine.low %v264, %v265
    %v754 = vunpack.c.l.s4 1983009808
    %v755 = vunpack.c.0.s8 %v754
    %v756 = vlaneseq
    %v757 = vshrl.u32 %v756, 7
    %v758 = vsub.s32 %v755, %v757
    %v759 = vrot.slane %v752, %v758
    %760 = vrot.lane.b32.xlu0 %v759, 5
    %v761 = vpop.permute.xlu0 %760
    %v762 = vrot.slane %v761, 6
    %vm763 = vcmask 39936
    %v764 = vsel %vm763, %v762, %v761
    %v766 = vmul.f32 %v749, %v764
    %768 = vrot.lane.b32.xlu0 %v766, 124
    %v769 = vpop.permute.xlu0 %768
    %v770 = vrot.slane %v769, 2
    %v771 = vsel %vm682, %v769, %v770
    %v773 = vadd.f32 %v597, %v771
    %s774 = sld [smem:[#allocation3 + $0x6]]
    %v775 = vld [vmem:[#allocation2] sm:$0x3f]
    %v776 = vstv %s774
    %v777 = vmul.f32 %v776, %v775
    %s778 = sld [smem:[#allocation3 + $0xd]]
    %v779 = vstv %s778
    %v780 = vmul.f32 %v779, %v775
    %782 = vrot.lane.b32.xlu0 %v780, 112
    %v783 = vpop.permute.xlu0 %782
    %v784 = vrot.slane %v783, 2
    %v785 = vsel %vm284, %v783, %v784
    %v787 = vadd.f32 %v777, %v785
    %s788 = sld [smem:[#allocation3 + $0x14]]
    %v789 = vstv %s788
    %v790 = vmul.f32 %v789, %v775
    %792 = vrot.lane.b32.xlu0 %v790, 96
    %v793 = vpop.permute.xlu0 %792
    %v794 = vrot.slane %v793, 2
    %v795 = vsel %vm295, %v793, %v794
    %v797 = vadd.f32 %v787, %v795
    %s798 = sld [smem:[#allocation3 + $0x1b]]
    %v799 = vstv %s798
    %v800 = vmul.f32 %v799, %v775
    %802 = vrot.lane.b32.xlu0 %v800, 80
    %v803 = vpop.permute.xlu0 %802
    %v804 = vrot.slane %v803, 2
    %v805 = vsel %vm306, %v803, %v804
    %v807 = vadd.f32 %v797, %v805
    %s808 = sld [smem:[#allocation3 + $0x22]]
    %v809 = vstv %s808
    %v810 = vmul.f32 %v809, %v775
    %812 = vrot.lane.b32.xlu0 %v810, 64
    %v813 = vpop.permute.xlu0 %812
    %v814 = vrot.slane %v813, 2
    %v815 = vsel %vm317, %v813, %v814
    %v817 = vadd.f32 %v807, %v815
    %s818 = sld [smem:[#allocation3 + $0x29]]
    %v819 = vstv %s818
    %v820 = vmul.f32 %v819, %v775
    %822 = vrot.lane.b32.xlu0 %v820, 48
    %v823 = vpop.permute.xlu0 %822
    %v824 = vrot.slane %v823, 2
    %v825 = vsel %vm328, %v823, %v824
    %v827 = vadd.f32 %v817, %v825
    %s828 = sld [smem:[#allocation3 + $0x30]]
    %v829 = vstv %s828
    %v830 = vmul.f32 %v829, %v775
    %832 = vrot.lane.b32.xlu0 %v830, 32
    %v833 = vpop.permute.xlu0 %832
    %v834 = vrot.slane %v833, 2
    %v835 = vsel %vm339, %v833, %v834
    %v837 = vadd.f32 %v827, %v835
    %v840 = vcombine.low %v270, %v271
    %v842 = vunpack.c.l.s4 1983009808
    %v843 = vunpack.c.0.s8 %v842
    %v844 = vlaneseq
    %v845 = vshrl.u32 %v844, 7
    %v846 = vsub.s32 %v843, %v845
    %v847 = vrot.slane %v840, %v846
    %848 = vrot.lane.b32.xlu0 %v847, 6
    %v849 = vpop.permute.xlu0 %848
    %v850 = vrot.slane %v849, 6
    %vm851 = vcmask 48128
    %v852 = vsel %vm851, %v850, %v849
    %v854 = vmul.f32 %v837, %v852
    %856 = vrot.lane.b32.xlu0 %v854, 122
    %v857 = vpop.permute.xlu0 %856
    %v858 = vrot.slane %v857, 2
    %vm859 = vcmask 998400
    %v860 = vsel %vm859, %v857, %v858
    %v862 = vadd.f32 %v685, %v860
    %s863 = sld [smem:[#allocation3 + $0x31]]
    %v864 = vld [vmem:[%s41] sm:$0xf]
    %v865 = vstv %s863
    %v866 = vmul.f32 %v865, %v864
    %s867 = sld [smem:[#allocation3 + $0x38]]
    %v868 = vld [vmem:[%s41] sm:$0x3f]
    %v869 = vstv %s867
    %v870 = vmul.f32 %v869, %v868
    %872 = vrot.lane.b32.xlu0 %v870, 112
    %v873 = vpop.permute.xlu0 %872
    %v874 = vrot.slane %v873, 2
    %v875 = vsel %vm284, %v873, %v874
    %v877 = vadd.f32 %v866, %v875
    %s878 = sld [smem:[#allocation3 + $0x3f]]
    %v879 = vstv %s878
    %v880 = vmul.f32 %v879, %v868
    %882 = vrot.lane.b32.xlu0 %v880, 96
    %v883 = vpop.permute.xlu0 %882
    %v884 = vrot.slane %v883, 2
    %v885 = vsel %vm295, %v883, %v884
    %v887 = vadd.f32 %v877, %v885
    %s888 = sld [smem:[#allocation3 + $0x46]]
    %v889 = vstv %s888
    %v890 = vmul.f32 %v889, %v868
    %892 = vrot.lane.b32.xlu0 %v890, 80
    %v893 = vpop.permute.xlu0 %892
    %v894 = vrot.slane %v893, 2
    %v895 = vsel %vm306, %v893, %v894
    %v897 = vadd.f32 %v887, %v895
    %s898 = sld [smem:[#allocation3 + $0x4d]]
    %v899 = vstv %s898
    %v900 = vmul.f32 %v899, %v868
    %902 = vrot.lane.b32.xlu0 %v900, 64
    %v903 = vpop.permute.xlu0 %902
    %v904 = vrot.slane %v903, 2
    %v905 = vsel %vm317, %v903, %v904
    %v907 = vadd.f32 %v897, %v905
    %s908 = sld [smem:[#allocation3 + $0x54]]
    %v909 = vstv %s908
    %v910 = vmul.f32 %v909, %v868
    %912 = vrot.lane.b32.xlu0 %v910, 48
    %v913 = vpop.permute.xlu0 %912
    %v914 = vrot.slane %v913, 2
    %v915 = vsel %vm328, %v913, %v914
    %v917 = vadd.f32 %v907, %v915
    %s918 = sld [smem:[#allocation3 + $0x5b]]
    %v919 = vstv %s918
    %v920 = vmul.f32 %v919, %v868
    %922 = vrot.lane.b32.xlu0 %v920, 32
    %v923 = vpop.permute.xlu0 %922
    %v924 = vrot.slane %v923, 2
    %v925 = vsel %vm339, %v923, %v924
    %v927 = vadd.f32 %v917, %v925
    %v928 = vmul.f32 %v927, %v352
    %v929 = vadd.f32 %v862, %v928
    %s930 = sld [smem:[#allocation3 + $0x32]]
    %v931 = vld [vmem:[%s41] sm:$0x3f]
    %v932 = vstv %s930
    %v933 = vmul.f32 %v932, %v931
    %s934 = sld [smem:[#allocation3 + $0x39]]
    %v935 = vstv %s934
    %v936 = vmul.f32 %v935, %v931
    %938 = vrot.lane.b32.xlu0 %v936, 112
    %v939 = vpop.permute.xlu0 %938
    %v940 = vrot.slane %v939, 2
    %v941 = vsel %vm284, %v939, %v940
    %v943 = vadd.f32 %v933, %v941
    %s944 = sld [smem:[#allocation3 + $0x40]]
    %v945 = vstv %s944
    %v946 = vmul.f32 %v945, %v931
    %948 = vrot.lane.b32.xlu0 %v946, 96
    %v949 = vpop.permute.xlu0 %948
    %v950 = vrot.slane %v949, 2
    %v951 = vsel %vm295, %v949, %v950
    %v953 = vadd.f32 %v943, %v951
    %s954 = sld [smem:[#allocation3 + $0x47]]
    %v955 = vstv %s954
    %v956 = vmul.f32 %v955, %v931
    %958 = vrot.lane.b32.xlu0 %v956, 80
    %v959 = vpop.permute.xlu0 %958
    %v960 = vrot.slane %v959, 2
    %v961 = vsel %vm306, %v959, %v960
    %v963 = vadd.f32 %v953, %v961
    %s964 = sld [smem:[#allocation3 + $0x4e]]
    %v965 = vstv %s964
    %v966 = vmul.f32 %v965, %v931
    %968 = vrot.lane.b32.xlu0 %v966, 64
    %v969 = vpop.permute.xlu0 %968
    %v970 = vrot.slane %v969, 2
    %v971 = vsel %vm317, %v969, %v970
    %v973 = vadd.f32 %v963, %v971
    %s974 = sld [smem:[#allocation3 + $0x55]]
    %v975 = vstv %s974
    %v976 = vmul.f32 %v975, %v931
    %978 = vrot.lane.b32.xlu0 %v976, 48
    %v979 = vpop.permute.xlu0 %978
    %v980 = vrot.slane %v979, 2
    %v981 = vsel %vm328, %v979, %v980
    %v983 = vadd.f32 %v973, %v981
    %s984 = sld [smem:[#allocation3 + $0x5c]]
    %v985 = vstv %s984
    %v986 = vmul.f32 %v985, %v931
    %988 = vrot.lane.b32.xlu0 %v986, 32
    %v989 = vpop.permute.xlu0 %988
    %v990 = vrot.slane %v989, 2
    %v991 = vsel %vm339, %v989, %v990
    %v993 = vadd.f32 %v983, %v991
    %v994 = vmul.f32 %v993, %v434
    %v995 = vadd.f32 %v773, %v994
    %s996 = sld [smem:[#allocation3 + $0x33]]
    %v997 = vld [vmem:[%s41] sm:$0x3f]
    %v998 = vstv %s996
    %v999 = vmul.f32 %v998, %v997
    %s1000 = sld [smem:[#allocation3 + $0x3a]]
    %v1001 = vstv %s1000
    %v1002 = vmul.f32 %v1001, %v997
    %1004 = vrot.lane.b32.xlu0 %v1002, 112
    %v1005 = vpop.permute.xlu0 %1004
    %v1006 = vrot.slane %v1005, 2
    %v1007 = vsel %vm284, %v1005, %v1006
    %v1009 = vadd.f32 %v999, %v1007
    %s1010 = sld [smem:[#allocation3 + $0x41]]
    %v1011 = vstv %s1010
    %v1012 = vmul.f32 %v1011, %v997
    %1014 = vrot.lane.b32.xlu0 %v1012, 96
    %v1015 = vpop.permute.xlu0 %1014
    %v1016 = vrot.slane %v1015, 2
    %v1017 = vsel %vm295, %v1015, %v1016
    %v1019 = vadd.f32 %v1009, %v1017
    %s1020 = sld [smem:[#allocation3 + $0x48]]
    %v1021 = vstv %s1020
    %v1022 = vmul.f32 %v1021, %v997
    %1024 = vrot.lane.b32.xlu0 %v1022, 80
    %v1025 = vpop.permute.xlu0 %1024
    %v1026 = vrot.slane %v1025, 2
    %v1027 = vsel %vm306, %v1025, %v1026
    %v1029 = vadd.f32 %v1019, %v1027
    %s1030 = sld [smem:[#allocation3 + $0x4f]]
    %v1031 = vstv %s1030
    %v1032 = vmul.f32 %v1031, %v997
    %1034 = vrot.lane.b32.xlu0 %v1032, 64
    %v1035 = vpop.permute.xlu0 %1034
    %v1036 = vrot.slane %v1035, 2
    %v1037 = vsel %vm317, %v1035, %v1036
    %v1039 = vadd.f32 %v1029, %v1037
    %s1040 = sld [smem:[#allocation3 + $0x56]]
    %v1041 = vstv %s1040
    %v1042 = vmul.f32 %v1041, %v997
    %1044 = vrot.lane.b32.xlu0 %v1042, 48
    %v1045 = vpop.permute.xlu0 %1044
    %v1046 = vrot.slane %v1045, 2
    %v1047 = vsel %vm328, %v1045, %v1046
    %v1049 = vadd.f32 %v1039, %v1047
    %s1050 = sld [smem:[#allocation3 + $0x5d]]
    %v1051 = vstv %s1050
    %v1052 = vmul.f32 %v1051, %v997
    %1054 = vrot.lane.b32.xlu0 %v1052, 32
    %v1055 = vpop.permute.xlu0 %1054
    %v1056 = vrot.slane %v1055, 2
    %v1057 = vsel %vm339, %v1055, %v1056
    %v1059 = vadd.f32 %v1049, %v1057
    %v1060 = vmul.f32 %v1059, %v516
    %1062 = vrot.lane.b32.xlu0 %v1060, 126
    %v1063 = vpop.permute.xlu0 %1062
    %v1064 = vrot.slane %v1063, 2
    %v1065 = vsel %vm523, %v1063, %v1064
    %v1067 = vadd.f32 %v929, %v1065
    %s1068 = sld [smem:[#allocation3 + $0x34]]
    %v1069 = vld [vmem:[%s41] sm:$0x3f]
    %v1070 = vstv %s1068
    %v1071 = vmul.f32 %v1070, %v1069
    %s1072 = sld [smem:[#allocation3 + $0x3b]]
    %v1073 = vstv %s1072
    %v1074 = vmul.f32 %v1073, %v1069
    %1076 = vrot.lane.b32.xlu0 %v1074, 112
    %v1077 = vpop.permute.xlu0 %1076
    %v1078 = vrot.slane %v1077, 2
    %v1079 = vsel %vm284, %v1077, %v1078
    %v1081 = vadd.f32 %v1071, %v1079
    %s1082 = sld [smem:[#allocation3 + $0x42]]
    %v1083 = vstv %s1082
    %v1084 = vmul.f32 %v1083, %v1069
    %1086 = vrot.lane.b32.xlu0 %v1084, 96
    %v1087 = vpop.permute.xlu0 %1086
    %v1088 = vrot.slane %v1087, 2
    %v1089 = vsel %vm295, %v1087, %v1088
    %v1091 = vadd.f32 %v1081, %v1089
    %s1092 = sld [smem:[#allocation3 + $0x49]]
    %v1093 = vstv %s1092
    %v1094 = vmul.f32 %v1093, %v1069
    %1096 = vrot.lane.b32.xlu0 %v1094, 80
    %v1097 = vpop.permute.xlu0 %1096
    %v1098 = vrot.slane %v1097, 2
    %v1099 = vsel %vm306, %v1097, %v1098
    %v1101 = vadd.f32 %v1091, %v1099
    %s1102 = sld [smem:[#allocation3 + $0x50]]
    %v1103 = vstv %s1102
    %v1104 = vmul.f32 %v1103, %v1069
    %1106 = vrot.lane.b32.xlu0 %v1104, 64
    %v1107 = vpop.permute.xlu0 %1106
    %v1108 = vrot.slane %v1107, 2
    %v1109 = vsel %vm317, %v1107, %v1108
    %v1111 = vadd.f32 %v1101, %v1109
    %s1112 = sld [smem:[#allocation3 + $0x57]]
    %v1113 = vstv %s1112
    %v1114 = vmul.f32 %v1113, %v1069
    %1116 = vrot.lane.b32.xlu0 %v1114, 48
    %v1117 = vpop.permute.xlu0 %1116
    %v1118 = vrot.slane %v1117, 2
    %v1119 = vsel %vm328, %v1117, %v1118
    %v1121 = vadd.f32 %v1111, %v1119
    %s1122 = sld [smem:[#allocation3 + $0x5e]]
    %v1123 = vstv %s1122
    %v1124 = vmul.f32 %v1123, %v1069
    %1126 = vrot.lane.b32.xlu0 %v1124, 32
    %v1127 = vpop.permute.xlu0 %1126
    %v1128 = vrot.slane %v1127, 2
    %v1129 = vsel %vm339, %v1127, %v1128
    %v1131 = vadd.f32 %v1121, %v1129
    %1133 = vrot.lane.b32.xlu0 %v1131, 126
    %v1134 = vpop.permute.xlu0 %1133
    %v1135 = vrot.slane %v1134, 2
    %v1136 = vsel %vm523, %v1134, %v1135
    %v1138 = vadd.f32 %v995, %v1136
    %s1139 = sld [smem:[#allocation3 + $0x35]]
    %v1140 = vstv %s1139
    %v1141 = vmul.f32 %v1140, %v1069
    %s1142 = sld [smem:[#allocation3 + $0x3c]]
    %v1143 = vstv %s1142
    %v1144 = vmul.f32 %v1143, %v1069
    %1146 = vrot.lane.b32.xlu0 %v1144, 112
    %v1147 = vpop.permute.xlu0 %1146
    %v1148 = vrot.slane %v1147, 2
    %v1149 = vsel %vm284, %v1147, %v1148
    %v1151 = vadd.f32 %v1141, %v1149
    %s1152 = sld [smem:[#allocation3 + $0x43]]
    %v1153 = vstv %s1152
    %v1154 = vmul.f32 %v1153, %v1069
    %1156 = vrot.lane.b32.xlu0 %v1154, 96
    %v1157 = vpop.permute.xlu0 %1156
    %v1158 = vrot.slane %v1157, 2
    %v1159 = vsel %vm295, %v1157, %v1158
    %v1161 = vadd.f32 %v1151, %v1159
    %s1162 = sld [smem:[#allocation3 + $0x4a]]
    %v1163 = vstv %s1162
    %v1164 = vmul.f32 %v1163, %v1069
    %1166 = vrot.lane.b32.xlu0 %v1164, 80
    %v1167 = vpop.permute.xlu0 %1166
    %v1168 = vrot.slane %v1167, 2
    %v1169 = vsel %vm306, %v1167, %v1168
    %v1171 = vadd.f32 %v1161, %v1169
    %s1172 = sld [smem:[#allocation3 + $0x51]]
    %v1173 = vstv %s1172
    %v1174 = vmul.f32 %v1173, %v1069
    %1176 = vrot.lane.b32.xlu0 %v1174, 64
    %v1177 = vpop.permute.xlu0 %1176
    %v1178 = vrot.slane %v1177, 2
    %v1179 = vsel %vm317, %v1177, %v1178
    %v1181 = vadd.f32 %v1171, %v1179
    %s1182 = sld [smem:[#allocation3 + $0x58]]
    %v1183 = vstv %s1182
    %v1184 = vmul.f32 %v1183, %v1069
    %1186 = vrot.lane.b32.xlu0 %v1184, 48
    %v1187 = vpop.permute.xlu0 %1186
    %v1188 = vrot.slane %v1187, 2
    %v1189 = vsel %vm328, %v1187, %v1188
    %v1191 = vadd.f32 %v1181, %v1189
    %s1192 = sld [smem:[#allocation3 + $0x5f]]
    %v1193 = vstv %s1192
    %v1194 = vmul.f32 %v1193, %v1069
    %1196 = vrot.lane.b32.xlu0 %v1194, 32
    %v1197 = vpop.permute.xlu0 %1196
    %v1198 = vrot.slane %v1197, 2
    %v1199 = vsel %vm339, %v1197, %v1198
    %v1201 = vadd.f32 %v1191, %v1199
    %v1202 = vmul.f32 %v1201, %v675
    %1204 = vrot.lane.b32.xlu0 %v1202, 124
    %v1205 = vpop.permute.xlu0 %1204
    %v1206 = vrot.slane %v1205, 2
    %v1207 = vsel %vm682, %v1205, %v1206
    %v1209 = vadd.f32 %v1067, %v1207
    %s1210 = sld [smem:[#allocation3 + $0x36]]
    %v1211 = vld [vmem:[%s41] sm:$0x3f]
    %v1212 = vstv %s1210
    %v1213 = vmul.f32 %v1212, %v1211
    %s1214 = sld [smem:[#allocation3 + $0x3d]]
    %v1215 = vstv %s1214
    %v1216 = vmul.f32 %v1215, %v1211
    %1218 = vrot.lane.b32.xlu0 %v1216, 112
    %v1219 = vpop.permute.xlu0 %1218
    %v1220 = vrot.slane %v1219, 2
    %v1221 = vsel %vm284, %v1219, %v1220
    %v1223 = vadd.f32 %v1213, %v1221
    %s1224 = sld [smem:[#allocation3 + $0x44]]
    %v1225 = vstv %s1224
    %v1226 = vmul.f32 %v1225, %v1211
    %1228 = vrot.lane.b32.xlu0 %v1226, 96
    %v1229 = vpop.permute.xlu0 %1228
    %v1230 = vrot.slane %v1229, 2
    %v1231 = vsel %vm295, %v1229, %v1230
    %v1233 = vadd.f32 %v1223, %v1231
    %s1234 = sld [smem:[#allocation3 + $0x4b]]
    %v1235 = vstv %s1234
    %v1236 = vmul.f32 %v1235, %v1211
    %1238 = vrot.lane.b32.xlu0 %v1236, 80
    %v1239 = vpop.permute.xlu0 %1238
    %v1240 = vrot.slane %v1239, 2
    %v1241 = vsel %vm306, %v1239, %v1240
    %v1243 = vadd.f32 %v1233, %v1241
    %s1244 = sld [smem:[#allocation3 + $0x52]]
    %v1245 = vstv %s1244
    %v1246 = vmul.f32 %v1245, %v1211
    %1248 = vrot.lane.b32.xlu0 %v1246, 64
    %v1249 = vpop.permute.xlu0 %1248
    %v1250 = vrot.slane %v1249, 2
    %v1251 = vsel %vm317, %v1249, %v1250
    %v1253 = vadd.f32 %v1243, %v1251
    %s1254 = sld [smem:[#allocation3 + $0x59]]
    %v1255 = vstv %s1254
    %v1256 = vmul.f32 %v1255, %v1211
    %1258 = vrot.lane.b32.xlu0 %v1256, 48
    %v1259 = vpop.permute.xlu0 %1258
    %v1260 = vrot.slane %v1259, 2
    %v1261 = vsel %vm328, %v1259, %v1260
    %v1263 = vadd.f32 %v1253, %v1261
    %s1264 = sld [smem:[#allocation3 + $0x60]]
    %v1265 = vstv %s1264
    %v1266 = vmul.f32 %v1265, %v1211
    %1268 = vrot.lane.b32.xlu0 %v1266, 32
    %v1269 = vpop.permute.xlu0 %1268
    %v1270 = vrot.slane %v1269, 2
    %v1271 = vsel %vm339, %v1269, %v1270
    %v1273 = vadd.f32 %v1263, %v1271
    %v1274 = vmul.f32 %v1273, %v764
    %1276 = vrot.lane.b32.xlu0 %v1274, 124
    %v1277 = vpop.permute.xlu0 %1276
    %v1278 = vrot.slane %v1277, 2
    %v1279 = vsel %vm682, %v1277, %v1278
    %v1281 = vadd.f32 %v1138, %v1279
    %s1282 = sld [smem:[#allocation3 + $0x37]]
    %v1283 = vld [vmem:[%s41] sm:$0x3f]
    %v1284 = vstv %s1282
    %v1285 = vmul.f32 %v1284, %v1283
    %s1286 = sld [smem:[#allocation3 + $0x3e]]
    %v1287 = vstv %s1286
    %v1288 = vmul.f32 %v1287, %v1283
    %1290 = vrot.lane.b32.xlu0 %v1288, 112
    %v1291 = vpop.permute.xlu0 %1290
    %v1292 = vrot.slane %v1291, 2
    %v1293 = vsel %vm284, %v1291, %v1292
    %v1295 = vadd.f32 %v1285, %v1293
    %s1296 = sld [smem:[#allocation3 + $0x45]]
    %v1297 = vstv %s1296
    %v1298 = vmul.f32 %v1297, %v1283
    %1300 = vrot.lane.b32.xlu0 %v1298, 96
    %v1301 = vpop.permute.xlu0 %1300
    %v1302 = vrot.slane %v1301, 2
    %v1303 = vsel %vm295, %v1301, %v1302
    %v1305 = vadd.f32 %v1295, %v1303
    %s1306 = sld [smem:[#allocation3 + $0x4c]]
    %v1307 = vstv %s1306
    %v1308 = vmul.f32 %v1307, %v1283
    %1310 = vrot.lane.b32.xlu0 %v1308, 80
    %v1311 = vpop.permute.xlu0 %1310
    %v1312 = vrot.slane %v1311, 2
    %v1313 = vsel %vm306, %v1311, %v1312
    %v1315 = vadd.f32 %v1305, %v1313
    %s1316 = sld [smem:[#allocation3 + $0x53]]
    %v1317 = vstv %s1316
    %v1318 = vmul.f32 %v1317, %v1283
    %1320 = vrot.lane.b32.xlu0 %v1318, 64
    %v1321 = vpop.permute.xlu0 %1320
    %v1322 = vrot.slane %v1321, 2
    %v1323 = vsel %vm317, %v1321, %v1322
    %v1325 = vadd.f32 %v1315, %v1323
    %s1326 = sld [smem:[#allocation3 + $0x5a]]
    %v1327 = vstv %s1326
    %v1328 = vmul.f32 %v1327, %v1283
    %1330 = vrot.lane.b32.xlu0 %v1328, 48
    %v1331 = vpop.permute.xlu0 %1330
    %v1332 = vrot.slane %v1331, 2
    %v1333 = vsel %vm328, %v1331, %v1332
    %v1335 = vadd.f32 %v1325, %v1333
    %s1336 = sld [smem:[#allocation3 + $0x61]]
    %v1337 = vstv %s1336
    %v1338 = vmul.f32 %v1337, %v1283
    %1340 = vrot.lane.b32.xlu0 %v1338, 32
    %v1341 = vpop.permute.xlu0 %1340
    %v1342 = vrot.slane %v1341, 2
    %v1343 = vsel %vm339, %v1341, %v1342
    %v1345 = vadd.f32 %v1335, %v1343
    %v1346 = vmul.f32 %v1345, %v852
    %1348 = vrot.lane.b32.xlu0 %v1346, 122
    %v1349 = vpop.permute.xlu0 %1348
    %v1350 = vrot.slane %v1349, 2
    %v1351 = vsel %vm859, %v1349, %v1350
    %v1353 = vadd.f32 %v1209, %v1351
    %1355 = vrot.lane.b32.xlu0 %v1281, 127
    %v1356 = vpop.permute.xlu0 %1355
    %v1357 = vrot.slane %v1356, 2
    %vm1358 = vcmask 1039360
    %v1359 = vsel %vm1358, %v1356, %v1357
    %v1361 = vadd.f32 %v1353, %v1359
    %s1362 = sld [smem:[#allocation3 + $0x62]]
    %v1363 = vstv %s1362
    %v1364 = vadd.f32 %v1361, %v1363
    %v1365 = vxor.u32 %v1364, 2147483648
    %v1366 = vmul.f32 %v1365, 1.442695
    %v1367 = vpow.pop %v1366
    %v1368 = vadd.f32 %v1367, 1.0
    %v1369 = vrcp.pop %v1368
    %v1370 = vmul.f32 1.0, %v1369
    %v1371 = vld [vmem:[#allocation7] sm:$0xff]
    %v1373 = vlaneseq
    %v1374 = vshrl.u32 %v1373, 7
    %v1375 = vsub.s32 0, %v1374
    %v1376 = vrot.slane %v1370, %v1375
    %v1377 = vlaneseq
    %v1378 = vshrl.u32 %v1377, 7
    %v1379 = vsub.s32 2, %v1378
    %v1380 = vrot.slane %v1370, %v1379
    %v1383 = vlaneseq
    %v1384 = vshrl.u32 %v1383, 7
    %v1385 = vsub.s32 0, %v1384
    %v1386 = vrot.slane %v1376, %v1385
    %v1387 = vlaneseq
    %v1388 = vshrl.u32 %v1387, 7
    %v1389 = vsub.s32 0, %v1388
    %v1390 = vrot.slane %v1380, %v1389
    %v1393 = vcombine.low %v1386, %v1390
    %v1395 = vmul.f32 %v1371, %v1393
    %1396 = vst [vmem:[#allocation8] sm:$0xff] %v1395
    %v1397 = vld [vmem:[%s128] sm:$0xff]
    %v1398 = vlaneseq
    %v1399 = vshrl.u32 %v1398, 7
    %v1400 = vsub.s32 1, %v1399
    %v1401 = vrot.slane %v1370, %v1400
    %v1402 = vlaneseq
    %v1403 = vshrl.u32 %v1402, 7
    %v1404 = vsub.s32 3, %v1403
    %v1405 = vrot.slane %v1370, %v1404
    %v1408 = vlaneseq
    %v1409 = vshrl.u32 %v1408, 7
    %v1410 = vsub.s32 1, %v1409
    %v1411 = vrot.slane %v1401, %v1410
    %v1412 = vlaneseq
    %v1413 = vshrl.u32 %v1412, 7
    %v1414 = vsub.s32 1, %v1413
    %v1415 = vrot.slane %v1405, %v1414
    %v1418 = vcombine.low %v1411, %v1415
    %v1420 = vmul.f32 %v1397, %v1418
    %s1421 = scalar_lea.vmem [#allocation8], 8
    %1422 = vst [vmem:[%s1421] sm:$0xff] %v1420
    // Predicated region
    $region18: #{tpu_custom_call.1} parent=1 // pred_check
      _
    $region19: #{tpu_custom_call.1} parent=1 // pred_check_branch
      %1424 = sbr.rel (0) target = $region21
    $region20: #{tpu_custom_call.1} parent=1 // pred_region
      %s1426 = ssub.s32 256, 256
      %1427 = vsyncadd [#allocation5], %s1426
      %s1428 = sshll.u32 [#allocation8], 4
      %s1429 = int_to_ptr.vmem [resolvable:$true] %s1428
      %1434 = dma.vmem_to_hbm [thread:$0]  %s1429, 256, %s2, [#allocation5], 128, 128, 8
    $region21: #{tpu_custom_call.1} parent=1 // pred_fallthru
      _
    // Predicated region
    $region22: #{tpu_custom_call.1} parent=1 // pred_check
      _
    $region23: #{tpu_custom_call.1} parent=1 // pred_check_branch
      %1436 = sbr.rel (0) target = $region25
    $region24: #{tpu_custom_call.1} parent=1 // pred_region
      %1437 = dma.done [#allocation5], 256
    $region25: #{tpu_custom_call.1} parent=1 // pred_fallthru
      _
    %1438 = vsyncpa [#allocation4], 1
    %1439 = vsyncpa [#allocation5], 1
    %1440 = vsyncpa [#allocation6], 1

</llo_original>
